<compile_context>
chip_gen: v5e
topology: v5e:2x2
jax: 0.10.0
libtpu: 0.0.40
codegen_flags: <defaults>
</compile_context>

<pallas_src>
import numpy as np
import jax
import jax.numpy as jnp
from jax.experimental import pallas as pl
from jax.experimental.pallas import tpu as pltpu

# ---- "FloodConfig" (synthetic, small) ---------------------------------------
STATE_DIM = 8
ACTION_DIM = 4
HIDDEN_DIM = 32
GRU_LAYERS = 2           # the fused recurrence below is specific to 2 layers

_H, _H2, _D, _A = HIDDEN_DIM, HIDDEN_DIM // 2, STATE_DIM, ACTION_DIM
_SLAB_COLS = 384         # 3 lane tiles: enough for the fused [2H, 9H] RHS
_L1I_OFF = 128           # column offset of gi1 block in the fused result
_L1H_OFF = 256           # column offset of gh1 block in the fused result

# ---- weight-slab layout (static; shared by host packer and kernel) ----------
# (name, load_rows, load_cols) — rows advance padded to multiples of 8,
# columns are always full 128-lane tiles so every slab load is lane-aligned.
_SLAB_SEGS = [
    ("w_rec", 2 * _H, 384),   # [[w_hh0|w_ih1|0],[0|0|w_hh1]]
    ("b_rec", 1, 384),        # [b_hh0 | b_ih1 | b_hh1]
    ("w_ih0", _D, 128),       # layer-0 input projection (hoisted)
    ("b_ih0", 1, 128),
    ("wa1", _H, 128),         # attention layer 1
    ("ba1", 1, 128),
    ("wa2", 128, 128),        # attention layer 2, row-padded to 128
    ("ba2", 1, 128),
    ("w_pf1", _H, 128),       # [wp1 | wf1]
    ("b_pf1", 1, 128),        # [bp1 | bf1]
    ("wp2", 128, 128),        # wp2 (+) I16 pass-through for f1, row-padded
    ("bp2", 1, 128),
    ("w_out", 128, 128),      # [wp3 (+) wf2], row-padded
    ("b_out", 1, 128),        # [bp3 | bf2]
]


def _build_layout(segs):
    layout, row = {}, 0
    for name, r, c in segs:
        layout[name] = (row, r, c)
        row += ((r + 7) // 8) * 8
    return layout, row


_SLAB_LAYOUT, _SLAB_ROWS = _build_layout(_SLAB_SEGS)


def pack_params(params):
    """Pack the 22 weight/bias arrays into one lane-dense [R, 384] f32 slab."""
    (w_ih0, w_hh0, b_ih0, b_hh0, w_ih1, w_hh1, b_ih1, b_hh1,
     wa1, ba1, wa2, ba2, wp1, bp1, wp2, bp2, wp3, bp3,
     wf1, bf1, wf2, bf2) = [np.asarray(p, np.float32) for p in params]
    H, H2, A = _H, _H2, _A

    slab = np.zeros((_SLAB_ROWS, _SLAB_COLS), np.float32)

    def put(name, block, r_off=0, c_off=0):
        r0 = _SLAB_LAYOUT[name][0]
        r, c = block.shape
        slab[r0 + r_off:r0 + r_off + r, c_off:c_off + c] = block

    # fused recurrence RHS / bias (one-step layer lag)
    put("w_rec", w_hh0, 0, 0)
    put("w_rec", w_ih1, 0, _L1I_OFF)
    put("w_rec", w_hh1, H, _L1H_OFF)
    put("b_rec", b_hh0, 0, 0)
    put("b_rec", b_ih1, 0, _L1I_OFF)
    put("b_rec", b_hh1, 0, _L1H_OFF)
    # hoisted layer-0 input projection
    put("w_ih0", w_ih0)
    put("b_ih0", b_ih0)
    # attention
    put("wa1", wa1)
    put("ba1", ba1)
    put("wa2", wa2)               # rows 16:128 stay zero (row padding)
    put("ba2", ba2)
    # fused policy/flood first layer: [wp1 | wf1]
    put("w_pf1", wp1, 0, 0)
    put("w_pf1", wf1, 0, H)
    put("b_pf1", bp1, 0, 0)
    put("b_pf1", bf1, 0, H)
    # policy layer 2 with f1 identity pass-through (f1 = relu(...) >= 0)
    put("wp2", wp2, 0, 0)
    put("wp2", np.eye(H2, dtype=np.float32), H, H)
    put("bp2", bp2, 0, 0)         # cols 32:48 MUST stay zero (pass-through)
    # fused output: block-diagonal [wp3 (+) wf2]
    put("w_out", wp3, 0, 0)
    put("w_out", wf2, H, A)
    put("b_out", bp3, 0, 0)
    put("b_out", bf2, 0, A)
    return jnp.asarray(slab)


# ---- Pallas kernel -----------------------------------------------------------
def _flood_gru_actor_kernel(x_ref, h0_ref, slab_ref,
                            act_ref, hid_ref, ctx_ref, flood_ref):
    # x_ref:     [B, T, D]   batch-major input sequence (no host transpose)
    # h0_ref:    [L, B, H]   initial hidden states
    # slab_ref:  [R, 384]    packed, lane-padded weights/biases
    # outputs:   act [B,A], hid [L,B,H], ctx [B,H], flood [B,1]
    H, A = HIDDEN_DIM, ACTION_DIM
    B, T, D = x_ref.shape
    f32 = jnp.float32

    def seg(name):
        r0, nr, nc = _SLAB_LAYOUT[name]
        return slab_ref[r0:r0 + nr, 0:nc]        # lane-aligned 128-multiple load

    # ---- hoisted layer-0 input projection over all T steps (one matmul) ------
    x2d = x_ref[...].reshape(B * T, D)
    gi0 = (jnp.dot(x2d, seg("w_ih0"), preferred_element_type=f32)
           + seg("b_ih0")).reshape(B, T, 128)    # cols 96:128 are zero padding

    # ---- fused 2-layer recurrence: ONE MXU push per step (T+1 steps total) ---
    w_rec = seg("w_rec")                                     # [2H, 384]
    b_rec = jnp.broadcast_to(seg("b_rec"), (B, _SLAB_COLS))  # hoisted broadcast

    hl0 = h0_ref[0]                                          # h_l0(t-1)
    hl1 = h0_ref[1]                                          # h_l1(t-2)
    l1_outs = []
    for t in range(T + 1):                                   # T=8 -> unrolled
        lhs = jnp.concatenate([hl0, hl1], axis=1)            # [B, 2H]
        res = jnp.dot(lhs, w_rec, preferred_element_type=f32) + b_rec
        # layer-0 update for step t: gh0 = res[:, 0:3H] (b_hh0 already added)
        if t < T:
            gi0_t = gi0[:, t, :]
            rz0 = jax.nn.sigmoid(gi0_t[:, :2 * H] + res[:, :2 * H])
            n0 = jnp.tanh(gi0_t[:, 2 * H:3 * H]
                          + rz0[:, :H] * res[:, 2 * H:3 * H])
            hl0_new = (1.0 - rz0[:, H:]) * n0 + rz0[:, H:] * hl0
        # layer-1 update for step t-1 (one-step lag): gi1/gh1 from same push
        if t >= 1:
            gi1 = res[:, _L1I_OFF:_L1I_OFF + 3 * H]
            gh1 = res[:, _L1H_OFF:_L1H_OFF + 3 * H]
            rz1 = jax.nn.sigmoid(gi1[:, :2 * H] + gh1[:, :2 * H])
            n1 = jnp.tanh(gi1[:, 2 * H:] + rz1[:, :H] * gh1[:, 2 * H:])
            hl1 = (1.0 - rz1[:, H:]) * n1 + rz1[:, H:] * hl1
            l1_outs.append(hl1)
        if t < T:
            hl0 = hl0_new

    gru_out = jnp.stack(l1_outs, axis=0)                     # [T, B, H]

    # ---- attention pooling over the sequence (two batched matmuls) -----------
    if T > 1:
        flat = gru_out.reshape(T * B, H)
        a = jnp.maximum(jnp.dot(flat, seg("wa1"), preferred_element_type=f32)
                        + seg("ba1"), 0.0)                   # [T*B,128], cols 16: = 0
        s_full = (jnp.dot(a, seg("wa2"), preferred_element_type=f32)
                  + seg("ba2"))                              # score in column 0
        s = s_full.reshape(T, B, 128)[:, :, 0:1]             # [T, B, 1]
        m = jnp.max(s, axis=0, keepdims=True)
        e = jnp.exp(s - m)
        attn = e * pl.reciprocal(jnp.sum(e, axis=0, keepdims=True), approx=False)
        context = jnp.sum(attn * gru_out, axis=0)            # [B, H]
    else:
        context = gru_out[0]

    # ---- fused policy / flood heads (3 serial MXU pushes) --------------------
    pf1 = jnp.maximum(jnp.dot(context, seg("w_pf1"), preferred_element_type=f32)
                      + seg("b_pf1"), 0.0)                   # [p1 | f1 | 0]
    p2f = jnp.maximum(jnp.dot(pf1, seg("wp2"), preferred_element_type=f32)
                      + seg("bp2"), 0.0)                     # [p2 | f1 | 0]
    outh = (jnp.dot(p2f, seg("w_out"), preferred_element_type=f32)
            + seg("b_out"))                                  # [logits | flood | 0]

    logits = outh[:, 0:A]
    lm = jnp.max(logits, axis=-1, keepdims=True)
    le = jnp.exp(logits - lm)
    action = le * pl.reciprocal(jnp.sum(le, axis=-1, keepdims=True), approx=False)
    flood = jax.nn.sigmoid(outh[:, A:A + 1])

    # ---- direct per-output stores (no lane concatenation) --------------------
    act_ref[...] = action
    hid_ref[0] = hl0
    hid_ref[1] = hl1
    ctx_ref[...] = context
    flood_ref[...] = flood


# ---- wrapper (no layout ops around the pallas_call) ---------------------------
@jax.jit
def flood_gru_actor_forward(state, hidden, slab):
    """state: [B, T, D] (batch-major); hidden: [L, B, H]; slab: [R, 384]."""
    B, T, D = state.shape
    H, A, L = HIDDEN_DIM, ACTION_DIM, GRU_LAYERS
    vmem = pl.BlockSpec(memory_space=pltpu.MemorySpace.VMEM)
    return pl.pallas_call(
        _flood_gru_actor_kernel,
        out_shape=(
            jax.ShapeDtypeStruct((B, A), jnp.float32),       # action_probs
            jax.ShapeDtypeStruct((L, B, H), jnp.float32),    # new_hidden
            jax.ShapeDtypeStruct((B, H), jnp.float32),       # context
            jax.ShapeDtypeStruct((B, 1), jnp.float32),       # flood_estimate
        ),
        in_specs=[vmem, vmem, vmem],
        out_specs=(vmem, vmem, vmem, vmem),
    )(state, hidden, slab)


# ---- deterministic parameter construction --------------------------------------
def make_params(key):
    H, H2, D, A = HIDDEN_DIM, HIDDEN_DIM // 2, STATE_DIM, ACTION_DIM
    ks = jax.random.split(key, 32)
    it = iter(ks)

    def mat(shape, scale=0.1):
        return (scale * jax.random.normal(next(it), shape)).astype(jnp.float32)

    # GRU weights stored transposed [in, out], gate order (r, z, n).
    w_ih0 = mat((D, 3 * H)); w_hh0 = mat((H, 3 * H))
    b_ih0 = mat((1, 3 * H)); b_hh0 = mat((1, 3 * H))
    w_ih1 = mat((H, 3 * H)); w_hh1 = mat((H, 3 * H))
    b_ih1 = mat((1, 3 * H)); b_hh1 = mat((1, 3 * H))
    wa1 = mat((H, H2)); ba1 = mat((1, H2)); wa2 = mat((H2, 1)); ba2 = mat((1, 1))
    wp1 = mat((H, H)); bp1 = mat((1, H))
    wp2 = mat((H, H)); bp2 = mat((1, H))
    wp3 = mat((H, A)); bp3 = mat((1, A))
    wf1 = mat((H, H2)); bf1 = mat((1, H2)); wf2 = mat((H2, 1)); bf2 = mat((1, 1))
    return (w_ih0, w_hh0, b_ih0, b_hh0, w_ih1, w_hh1, b_ih1, b_hh1,
            wa1, ba1, wa2, ba2,
            wp1, bp1, wp2, bp2, wp3, bp3,
            wf1, bf1, wf2, bf2)


# ---- pure-JAX reference (mirrors the PyTorch forward) ---------------------------
def ref_forward(state, hidden, params):
    (w_ih0, w_hh0, b_ih0, b_hh0, w_ih1, w_hh1, b_ih1, b_hh1,
     wa1, ba1, wa2, ba2, wp1, bp1, wp2, bp2, wp3, bp3,
     wf1, bf1, wf2, bf2) = params
    H = HIDDEN_DIM
    B, T, _ = state.shape

    def cell(x, h, w_ih, w_hh, b_ih, b_hh):
        gi = x @ w_ih + b_ih
        gh = h @ w_hh + b_hh
        r = jax.nn.sigmoid(gi[:, :H] + gh[:, :H])
        z = jax.nn.sigmoid(gi[:, H:2 * H] + gh[:, H:2 * H])
        n = jnp.tanh(gi[:, 2 * H:] + r * gh[:, 2 * H:])
        return (1 - z) * n + z * h

    h_l0, h_l1 = hidden[0], hidden[1]
    outs = []
    for t in range(T):
        h_l0 = cell(state[:, t, :], h_l0, w_ih0, w_hh0, b_ih0, b_hh0)
        h_l1 = cell(h_l0, h_l1, w_ih1, w_hh1, b_ih1, b_hh1)
        outs.append(h_l1)
    gru_out = jnp.stack(outs, axis=1)                       # [B, T, H]
    new_hidden = jnp.stack([h_l0, h_l1], axis=0)

    if T > 1:
        scores = (jnp.maximum(gru_out @ wa1 + ba1, 0.0) @ wa2 + ba2)[..., 0]
        attn = jax.nn.softmax(scores, axis=1)
        context = jnp.einsum("bt,bth->bh", attn, gru_out)
    else:
        context = gru_out[:, 0, :]

    p = jnp.maximum(context @ wp1 + bp1, 0.0)
    p = jnp.maximum(p @ wp2 + bp2, 0.0)
    action_probs = jax.nn.softmax(p @ wp3 + bp3, axis=-1)
    f = jnp.maximum(context @ wf1 + bf1, 0.0)
    flood = jax.nn.sigmoid(f @ wf2 + bf2)
    return action_probs, new_hidden, context, flood


if __name__ == "__main__":
    key = jax.random.PRNGKey(0)
    k_state, k_params = jax.random.split(key)

    B, T = 2, 8
    state = jax.random.normal(k_state, (B, T, STATE_DIM), dtype=jnp.float32)
    hidden = jnp.zeros((GRU_LAYERS, B, HIDDEN_DIM), dtype=jnp.float32)
    params = make_params(k_params)
    slab = pack_params(params)

    outs = flood_gru_actor_forward(state, hidden, slab)
    outs = jax.block_until_ready(outs)
    action_probs, new_hidden, context, flood_estimate = outs

    ref = ref_forward(state, hidden, params)
    for got, want in zip(outs, ref):
        np.testing.assert_allclose(np.asarray(got), np.asarray(want),
                                   rtol=1e-4, atol=2e-5)

    assert action_probs.shape == (B, ACTION_DIM)
    assert new_hidden.shape == (GRU_LAYERS, B, HIDDEN_DIM)
    assert context.shape == (B, HIDDEN_DIM)
    assert flood_estimate.shape == (B, 1)

    print("KERNEL_OK")
</pallas_src>

<mosaic_0001>
module attributes {stable_mosaic.version = 11 : i64} {
  func.func @_flood_gru_actor_kernel(%arg0: memref<2x8x8xf32, #tpu.memory_space<vmem>>, %arg1: memref<2x2x32xf32, #tpu.memory_space<vmem>>, %arg2: memref<576x384xf32, #tpu.memory_space<vmem>>, %arg3: memref<2x4xf32, #tpu.memory_space<vmem>>, %arg4: memref<2x2x32xf32, #tpu.memory_space<vmem>>, %arg5: memref<2x32xf32, #tpu.memory_space<vmem>>, %arg6: memref<2x1xf32, #tpu.memory_space<vmem>>) attributes {dimension_semantics = [], scalar_prefetch = 0 : i64, scratch_operands = 0 : i64, tpu.core_type = #tpu.core_type<tc>} {
    %c0 = arith.constant 0 : index
    %c0_0 = arith.constant 0 : index
    %c0_1 = arith.constant 0 : index
    %0 = vector.load %arg0[%c0, %c0_0, %c0_1] : memref<2x8x8xf32, #tpu.memory_space<vmem>>, vector<2x8x8xf32>
    %1 = vector.shape_cast %0 : vector<2x8x8xf32> to vector<16x8xf32>
    %c72 = arith.constant 72 : index
    %c0_2 = arith.constant 0 : index
    %2 = vector.load %arg2[%c72, %c0_2] : memref<576x384xf32, #tpu.memory_space<vmem>>, vector<8x128xf32>
    %cst = arith.constant dense<0.000000e+00> : vector<16x128xf32>
    %3 = tpu.matmul %1, %2, %cst {dimension_numbers = #tpu.dot_dimension_numbers<[1], [0], [0], [1], [0, 0, 1, 1], [], []>} : vector<16x8xf32>, vector<8x128xf32>, vector<16x128xf32> -> vector<16x128xf32>
    %c80 = arith.constant 80 : index
    %c0_3 = arith.constant 0 : index
    %4 = vector.load %arg2[%c80, %c0_3] : memref<576x384xf32, #tpu.memory_space<vmem>>, vector<1x128xf32>
    %5 = vector.broadcast %4 : vector<1x128xf32> to vector<16x128xf32>
    %6 = arith.addf %3, %5 : vector<16x128xf32>
    %7 = vector.shape_cast %6 : vector<16x128xf32> to vector<2x8x128xf32>
    %c0_4 = arith.constant 0 : index
    %c0_5 = arith.constant 0 : index
    %8 = vector.load %arg2[%c0_4, %c0_5] : memref<576x384xf32, #tpu.memory_space<vmem>>, vector<64x384xf32>
    %c64 = arith.constant 64 : index
    %c0_6 = arith.constant 0 : index
    %9 = vector.load %arg2[%c64, %c0_6] : memref<576x384xf32, #tpu.memory_space<vmem>>, vector<1x384xf32>
    %10 = vector.shape_cast %9 : vector<1x384xf32> to vector<1x384xf32>
    %11 = vector.broadcast %10 : vector<1x384xf32> to vector<2x384xf32>
    %c0_7 = arith.constant 0 : index
    %c0_8 = arith.constant 0 : index
    %c0_9 = arith.constant 0 : index
    %12 = vector.load %arg1[%c0_7, %c0_8, %c0_9] : memref<2x2x32xf32, #tpu.memory_space<vmem>>, vector<1x2x32xf32>
    %13 = vector.shape_cast %12 : vector<1x2x32xf32> to vector<2x32xf32>
    %c1 = arith.constant 1 : index
    %c0_10 = arith.constant 0 : index
    %c0_11 = arith.constant 0 : index
    %14 = vector.load %arg1[%c1, %c0_10, %c0_11] : memref<2x2x32xf32, #tpu.memory_space<vmem>>, vector<1x2x32xf32>
    %15 = vector.shape_cast %14 : vector<1x2x32xf32> to vector<2x32xf32>
    %16 = tpu.concatenate %13, %15 in 1 : vector<2x32xf32>, vector<2x32xf32> -> vector<2x64xf32>
    %cst_12 = arith.constant dense<0.000000e+00> : vector<2x384xf32>
    %17 = tpu.matmul %16, %8, %cst_12 {dimension_numbers = #tpu.dot_dimension_numbers<[1], [0], [0], [1], [0, 0, 1, 1], [], []>} : vector<2x64xf32>, vector<64x384xf32>, vector<2x384xf32> -> vector<2x384xf32>
    %18 = arith.addf %17, %11 : vector<2x384xf32>
    %19 = vector.extract_strided_slice %7 {offsets = [0, 0, 0], sizes = [2, 1, 128], strides = [1, 1, 1]} : vector<2x8x128xf32> to vector<2x1x128xf32>
    %20 = vector.shape_cast %19 : vector<2x1x128xf32> to vector<2x128xf32>
    %21 = vector.extract_strided_slice %20 {offsets = [0, 0], sizes = [2, 64], strides = [1, 1]} : vector<2x128xf32> to vector<2x64xf32>
    %22 = vector.extract_strided_slice %18 {offsets = [0, 0], sizes = [2, 64], strides = [1, 1]} : vector<2x384xf32> to vector<2x64xf32>
    %23 = arith.addf %21, %22 : vector<2x64xf32>
    %24 = arith.negf %23 : vector<2x64xf32>
    %25 = math.exp %24 : vector<2x64xf32>
    %cst_13 = arith.constant 1.000000e+00 : f32
    %26 = vector.broadcast %cst_13 : f32 to vector<2x64xf32>
    %27 = arith.addf %26, %25 : vector<2x64xf32>
    %28 = arith.divf %26, %27 : vector<2x64xf32>
    %29 = vector.extract_strided_slice %20 {offsets = [0, 64], sizes = [2, 32], strides = [1, 1]} : vector<2x128xf32> to vector<2x32xf32>
    %30 = vector.extract_strided_slice %28 {offsets = [0, 0], sizes = [2, 32], strides = [1, 1]} : vector<2x64xf32> to vector<2x32xf32>
    %31 = vector.extract_strided_slice %18 {offsets = [0, 64], sizes = [2, 32], strides = [1, 1]} : vector<2x384xf32> to vector<2x32xf32>
    %32 = arith.mulf %30, %31 : vector<2x32xf32>
    %33 = arith.addf %29, %32 : vector<2x32xf32>
    %34 = math.tanh %33 : vector<2x32xf32>
    %35 = vector.extract_strided_slice %28 {offsets = [0, 32], sizes = [2, 32], strides = [1, 1]} : vector<2x64xf32> to vector<2x32xf32>
    %cst_14 = arith.constant 1.000000e+00 : f32
    %36 = vector.broadcast %cst_14 : f32 to vector<2x32xf32>
    %37 = arith.subf %36, %35 : vector<2x32xf32>
    %38 = arith.mulf %37, %34 : vector<2x32xf32>
    %39 = vector.extract_strided_slice %28 {offsets = [0, 32], sizes = [2, 32], strides = [1, 1]} : vector<2x64xf32> to vector<2x32xf32>
    %40 = arith.mulf %39, %13 : vector<2x32xf32>
    %41 = arith.addf %38, %40 : vector<2x32xf32>
    %42 = tpu.concatenate %41, %15 in 1 : vector<2x32xf32>, vector<2x32xf32> -> vector<2x64xf32>
    %cst_15 = arith.constant dense<0.000000e+00> : vector<2x384xf32>
    %43 = tpu.matmul %42, %8, %cst_15 {dimension_numbers = #tpu.dot_dimension_numbers<[1], [0], [0], [1], [0, 0, 1, 1], [], []>} : vector<2x64xf32>, vector<64x384xf32>, vector<2x384xf32> -> vector<2x384xf32>
    %44 = arith.addf %43, %11 : vector<2x384xf32>
    %45 = vector.extract_strided_slice %7 {offsets = [0, 1, 0], sizes = [2, 1, 128], strides = [1, 1, 1]} : vector<2x8x128xf32> to vector<2x1x128xf32>
    %46 = vector.shape_cast %45 : vector<2x1x128xf32> to vector<2x128xf32>
    %47 = vector.extract_strided_slice %46 {offsets = [0, 0], sizes = [2, 64], strides = [1, 1]} : vector<2x128xf32> to vector<2x64xf32>
    %48 = vector.extract_strided_slice %44 {offsets = [0, 0], sizes = [2, 64], strides = [1, 1]} : vector<2x384xf32> to vector<2x64xf32>
    %49 = arith.addf %47, %48 : vector<2x64xf32>
    %50 = arith.negf %49 : vector<2x64xf32>
    %51 = math.exp %50 : vector<2x64xf32>
    %cst_16 = arith.constant 1.000000e+00 : f32
    %52 = vector.broadcast %cst_16 : f32 to vector<2x64xf32>
    %53 = arith.addf %52, %51 : vector<2x64xf32>
    %54 = arith.divf %52, %53 : vector<2x64xf32>
    %55 = vector.extract_strided_slice %46 {offsets = [0, 64], sizes = [2, 32], strides = [1, 1]} : vector<2x128xf32> to vector<2x32xf32>
    %56 = vector.extract_strided_slice %54 {offsets = [0, 0], sizes = [2, 32], strides = [1, 1]} : vector<2x64xf32> to vector<2x32xf32>
    %57 = vector.extract_strided_slice %44 {offsets = [0, 64], sizes = [2, 32], strides = [1, 1]} : vector<2x384xf32> to vector<2x32xf32>
    %58 = arith.mulf %56, %57 : vector<2x32xf32>
    %59 = arith.addf %55, %58 : vector<2x32xf32>
    %60 = math.tanh %59 : vector<2x32xf32>
    %61 = vector.extract_strided_slice %54 {offsets = [0, 32], sizes = [2, 32], strides = [1, 1]} : vector<2x64xf32> to vector<2x32xf32>
    %cst_17 = arith.constant 1.000000e+00 : f32
    %62 = vector.broadcast %cst_17 : f32 to vector<2x32xf32>
    %63 = arith.subf %62, %61 : vector<2x32xf32>
    %64 = arith.mulf %63, %60 : vector<2x32xf32>
    %65 = vector.extract_strided_slice %54 {offsets = [0, 32], sizes = [2, 32], strides = [1, 1]} : vector<2x64xf32> to vector<2x32xf32>
    %66 = arith.mulf %65, %41 : vector<2x32xf32>
    %67 = arith.addf %64, %66 : vector<2x32xf32>
    %68 = vector.extract_strided_slice %44 {offsets = [0, 128], sizes = [2, 96], strides = [1, 1]} : vector<2x384xf32> to vector<2x96xf32>
    %69 = vector.extract_strided_slice %44 {offsets = [0, 256], sizes = [2, 96], strides = [1, 1]} : vector<2x384xf32> to vector<2x96xf32>
    %70 = vector.extract_strided_slice %68 {offsets = [0, 0], sizes = [2, 64], strides = [1, 1]} : vector<2x96xf32> to vector<2x64xf32>
    %71 = vector.extract_strided_slice %69 {offsets = [0, 0], sizes = [2, 64], strides = [1, 1]} : vector<2x96xf32> to vector<2x64xf32>
    %72 = arith.addf %70, %71 : vector<2x64xf32>
    %73 = arith.negf %72 : vector<2x64xf32>
    %74 = math.exp %73 : vector<2x64xf32>
    %cst_18 = arith.constant 1.000000e+00 : f32
    %75 = vector.broadcast %cst_18 : f32 to vector<2x64xf32>
    %76 = arith.addf %75, %74 : vector<2x64xf32>
    %77 = arith.divf %75, %76 : vector<2x64xf32>
    %78 = vector.extract_strided_slice %68 {offsets = [0, 64], sizes = [2, 32], strides = [1, 1]} : vector<2x96xf32> to vector<2x32xf32>
    %79 = vector.extract_strided_slice %77 {offsets = [0, 0], sizes = [2, 32], strides = [1, 1]} : vector<2x64xf32> to vector<2x32xf32>
    %80 = vector.extract_strided_slice %69 {offsets = [0, 64], sizes = [2, 32], strides = [1, 1]} : vector<2x96xf32> to vector<2x32xf32>
    %81 = arith.mulf %79, %80 : vector<2x32xf32>
    %82 = arith.addf %78, %81 : vector<2x32xf32>
    %83 = math.tanh %82 : vector<2x32xf32>
    %84 = vector.extract_strided_slice %77 {offsets = [0, 32], sizes = [2, 32], strides = [1, 1]} : vector<2x64xf32> to vector<2x32xf32>
    %cst_19 = arith.constant 1.000000e+00 : f32
    %85 = vector.broadcast %cst_19 : f32 to vector<2x32xf32>
    %86 = arith.subf %85, %84 : vector<2x32xf32>
    %87 = arith.mulf %86, %83 : vector<2x32xf32>
    %88 = vector.extract_strided_slice %77 {offsets = [0, 32], sizes = [2, 32], strides = [1, 1]} : vector<2x64xf32> to vector<2x32xf32>
    %89 = arith.mulf %88, %15 : vector<2x32xf32>
    %90 = arith.addf %87, %89 : vector<2x32xf32>
    %91 = tpu.concatenate %67, %90 in 1 : vector<2x32xf32>, vector<2x32xf32> -> vector<2x64xf32>
    %cst_20 = arith.constant dense<0.000000e+00> : vector<2x384xf32>
    %92 = tpu.matmul %91, %8, %cst_20 {dimension_numbers = #tpu.dot_dimension_numbers<[1], [0], [0], [1], [0, 0, 1, 1], [], []>} : vector<2x64xf32>, vector<64x384xf32>, vector<2x384xf32> -> vector<2x384xf32>
    %93 = arith.addf %92, %11 : vector<2x384xf32>
    %94 = vector.extract_strided_slice %7 {offsets = [0, 2, 0], sizes = [2, 1, 128], strides = [1, 1, 1]} : vector<2x8x128xf32> to vector<2x1x128xf32>
    %95 = vector.shape_cast %94 : vector<2x1x128xf32> to vector<2x128xf32>
    %96 = vector.extract_strided_slice %95 {offsets = [0, 0], sizes = [2, 64], strides = [1, 1]} : vector<2x128xf32> to vector<2x64xf32>
    %97 = vector.extract_strided_slice %93 {offsets = [0, 0], sizes = [2, 64], strides = [1, 1]} : vector<2x384xf32> to vector<2x64xf32>
    %98 = arith.addf %96, %97 : vector<2x64xf32>
    %99 = arith.negf %98 : vector<2x64xf32>
    %100 = math.exp %99 : vector<2x64xf32>
    %cst_21 = arith.constant 1.000000e+00 : f32
    %101 = vector.broadcast %cst_21 : f32 to vector<2x64xf32>
    %102 = arith.addf %101, %100 : vector<2x64xf32>
    %103 = arith.divf %101, %102 : vector<2x64xf32>
    %104 = vector.extract_strided_slice %95 {offsets = [0, 64], sizes = [2, 32], strides = [1, 1]} : vector<2x128xf32> to vector<2x32xf32>
    %105 = vector.extract_strided_slice %103 {offsets = [0, 0], sizes = [2, 32], strides = [1, 1]} : vector<2x64xf32> to vector<2x32xf32>
    %106 = vector.extract_strided_slice %93 {offsets = [0, 64], sizes = [2, 32], strides = [1, 1]} : vector<2x384xf32> to vector<2x32xf32>
    %107 = arith.mulf %105, %106 : vector<2x32xf32>
    %108 = arith.addf %104, %107 : vector<2x32xf32>
    %109 = math.tanh %108 : vector<2x32xf32>
    %110 = vector.extract_strided_slice %103 {offsets = [0, 32], sizes = [2, 32], strides = [1, 1]} : vector<2x64xf32> to vector<2x32xf32>
    %cst_22 = arith.constant 1.000000e+00 : f32
    %111 = vector.broadcast %cst_22 : f32 to vector<2x32xf32>
    %112 = arith.subf %111, %110 : vector<2x32xf32>
    %113 = arith.mulf %112, %109 : vector<2x32xf32>
    %114 = vector.extract_strided_slice %103 {offsets = [0, 32], sizes = [2, 32], strides = [1, 1]} : vector<2x64xf32> to vector<2x32xf32>
    %115 = arith.mulf %114, %67 : vector<2x32xf32>
    %116 = arith.addf %113, %115 : vector<2x32xf32>
    %117 = vector.extract_strided_slice %93 {offsets = [0, 128], sizes = [2, 96], strides = [1, 1]} : vector<2x384xf32> to vector<2x96xf32>
    %118 = vector.extract_strided_slice %93 {offsets = [0, 256], sizes = [2, 96], strides = [1, 1]} : vector<2x384xf32> to vector<2x96xf32>
    %119 = vector.extract_strided_slice %117 {offsets = [0, 0], sizes = [2, 64], strides = [1, 1]} : vector<2x96xf32> to vector<2x64xf32>
    %120 = vector.extract_strided_slice %118 {offsets = [0, 0], sizes = [2, 64], strides = [1, 1]} : vector<2x96xf32> to vector<2x64xf32>
    %121 = arith.addf %119, %120 : vector<2x64xf32>
    %122 = arith.negf %121 : vector<2x64xf32>
    %123 = math.exp %122 : vector<2x64xf32>
    %cst_23 = arith.constant 1.000000e+00 : f32
    %124 = vector.broadcast %cst_23 : f32 to vector<2x64xf32>
    %125 = arith.addf %124, %123 : vector<2x64xf32>
    %126 = arith.divf %124, %125 : vector<2x64xf32>
    %127 = vector.extract_strided_slice %117 {offsets = [0, 64], sizes = [2, 32], strides = [1, 1]} : vector<2x96xf32> to vector<2x32xf32>
    %128 = vector.extract_strided_slice %126 {offsets = [0, 0], sizes = [2, 32], strides = [1, 1]} : vector<2x64xf32> to vector<2x32xf32>
    %129 = vector.extract_strided_slice %118 {offsets = [0, 64], sizes = [2, 32], strides = [1, 1]} : vector<2x96xf32> to vector<2x32xf32>
    %130 = arith.mulf %128, %129 : vector<2x32xf32>
    %131 = arith.addf %127, %130 : vector<2x32xf32>
    %132 = math.tanh %131 : vector<2x32xf32>
    %133 = vector.extract_strided_slice %126 {offsets = [0, 32], sizes = [2, 32], strides = [1, 1]} : vector<2x64xf32> to vector<2x32xf32>
    %cst_24 = arith.constant 1.000000e+00 : f32
    %134 = vector.broadcast %cst_24 : f32 to vector<2x32xf32>
    %135 = arith.subf %134, %133 : vector<2x32xf32>
    %136 = arith.mulf %135, %132 : vector<2x32xf32>
    %137 = vector.extract_strided_slice %126 {offsets = [0, 32], sizes = [2, 32], strides = [1, 1]} : vector<2x64xf32> to vector<2x32xf32>
    %138 = arith.mulf %137, %90 : vector<2x32xf32>
    %139 = arith.addf %136, %138 : vector<2x32xf32>
    %140 = tpu.concatenate %116, %139 in 1 : vector<2x32xf32>, vector<2x32xf32> -> vector<2x64xf32>
    %cst_25 = arith.constant dense<0.000000e+00> : vector<2x384xf32>
    %141 = tpu.matmul %140, %8, %cst_25 {dimension_numbers = #tpu.dot_dimension_numbers<[1], [0], [0], [1], [0, 0, 1, 1], [], []>} : vector<2x64xf32>, vector<64x384xf32>, vector<2x384xf32> -> vector<2x384xf32>
    %142 = arith.addf %141, %11 : vector<2x384xf32>
    %143 = vector.extract_strided_slice %7 {offsets = [0, 3, 0], sizes = [2, 1, 128], strides = [1, 1, 1]} : vector<2x8x128xf32> to vector<2x1x128xf32>
    %144 = vector.shape_cast %143 : vector<2x1x128xf32> to vector<2x128xf32>
    %145 = vector.extract_strided_slice %144 {offsets = [0, 0], sizes = [2, 64], strides = [1, 1]} : vector<2x128xf32> to vector<2x64xf32>
    %146 = vector.extract_strided_slice %142 {offsets = [0, 0], sizes = [2, 64], strides = [1, 1]} : vector<2x384xf32> to vector<2x64xf32>
    %147 = arith.addf %145, %146 : vector<2x64xf32>
    %148 = arith.negf %147 : vector<2x64xf32>
    %149 = math.exp %148 : vector<2x64xf32>
    %cst_26 = arith.constant 1.000000e+00 : f32
    %150 = vector.broadcast %cst_26 : f32 to vector<2x64xf32>
    %151 = arith.addf %150, %149 : vector<2x64xf32>
    %152 = arith.divf %150, %151 : vector<2x64xf32>
    %153 = vector.extract_strided_slice %144 {offsets = [0, 64], sizes = [2, 32], strides = [1, 1]} : vector<2x128xf32> to vector<2x32xf32>
    %154 = vector.extract_strided_slice %152 {offsets = [0, 0], sizes = [2, 32], strides = [1, 1]} : vector<2x64xf32> to vector<2x32xf32>
    %155 = vector.extract_strided_slice %142 {offsets = [0, 64], sizes = [2, 32], strides = [1, 1]} : vector<2x384xf32> to vector<2x32xf32>
    %156 = arith.mulf %154, %155 : vector<2x32xf32>
    %157 = arith.addf %153, %156 : vector<2x32xf32>
    %158 = math.tanh %157 : vector<2x32xf32>
    %159 = vector.extract_strided_slice %152 {offsets = [0, 32], sizes = [2, 32], strides = [1, 1]} : vector<2x64xf32> to vector<2x32xf32>
    %cst_27 = arith.constant 1.000000e+00 : f32
    %160 = vector.broadcast %cst_27 : f32 to vector<2x32xf32>
    %161 = arith.subf %160, %159 : vector<2x32xf32>
    %162 = arith.mulf %161, %158 : vector<2x32xf32>
    %163 = vector.extract_strided_slice %152 {offsets = [0, 32], sizes = [2, 32], strides = [1, 1]} : vector<2x64xf32> to vector<2x32xf32>
    %164 = arith.mulf %163, %116 : vector<2x32xf32>
    %165 = arith.addf %162, %164 : vector<2x32xf32>
    %166 = vector.extract_strided_slice %142 {offsets = [0, 128], sizes = [2, 96], strides = [1, 1]} : vector<2x384xf32> to vector<2x96xf32>
    %167 = vector.extract_strided_slice %142 {offsets = [0, 256], sizes = [2, 96], strides = [1, 1]} : vector<2x384xf32> to vector<2x96xf32>
    %168 = vector.extract_strided_slice %166 {offsets = [0, 0], sizes = [2, 64], strides = [1, 1]} : vector<2x96xf32> to vector<2x64xf32>
    %169 = vector.extract_strided_slice %167 {offsets = [0, 0], sizes = [2, 64], strides = [1, 1]} : vector<2x96xf32> to vector<2x64xf32>
    %170 = arith.addf %168, %169 : vector<2x64xf32>
    %171 = arith.negf %170 : vector<2x64xf32>
    %172 = math.exp %171 : vector<2x64xf32>
    %cst_28 = arith.constant 1.000000e+00 : f32
    %173 = vector.broadcast %cst_28 : f32 to vector<2x64xf32>
    %174 = arith.addf %173, %172 : vector<2x64xf32>
    %175 = arith.divf %173, %174 : vector<2x64xf32>
    %176 = vector.extract_strided_slice %166 {offsets = [0, 64], sizes = [2, 32], strides = [1, 1]} : vector<2x96xf32> to vector<2x32xf32>
    %177 = vector.extract_strided_slice %175 {offsets = [0, 0], sizes = [2, 32], strides = [1, 1]} : vector<2x64xf32> to vector<2x32xf32>
    %178 = vector.extract_strided_slice %167 {offsets = [0, 64], sizes = [2, 32], strides = [1, 1]} : vector<2x96xf32> to vector<2x32xf32>
    %179 = arith.mulf %177, %178 : vector<2x32xf32>
    %180 = arith.addf %176, %179 : vector<2x32xf32>
    %181 = math.tanh %180 : vector<2x32xf32>
    %182 = vector.extract_strided_slice %175 {offsets = [0, 32], sizes = [2, 32], strides = [1, 1]} : vector<2x64xf32> to vector<2x32xf32>
    %cst_29 = arith.constant 1.000000e+00 : f32
    %183 = vector.broadcast %cst_29 : f32 to vector<2x32xf32>
    %184 = arith.subf %183, %182 : vector<2x32xf32>
    %185 = arith.mulf %184, %181 : vector<2x32xf32>
    %186 = vector.extract_strided_slice %175 {offsets = [0, 32], sizes = [2, 32], strides = [1, 1]} : vector<2x64xf32> to vector<2x32xf32>
    %187 = arith.mulf %186, %139 : vector<2x32xf32>
    %188 = arith.addf %185, %187 : vector<2x32xf32>
    %189 = tpu.concatenate %165, %188 in 1 : vector<2x32xf32>, vector<2x32xf32> -> vector<2x64xf32>
    %cst_30 = arith.constant dense<0.000000e+00> : vector<2x384xf32>
    %190 = tpu.matmul %189, %8, %cst_30 {dimension_numbers = #tpu.dot_dimension_numbers<[1], [0], [0], [1], [0, 0, 1, 1], [], []>} : vector<2x64xf32>, vector<64x384xf32>, vector<2x384xf32> -> vector<2x384xf32>
    %191 = arith.addf %190, %11 : vector<2x384xf32>
    %192 = vector.extract_strided_slice %7 {offsets = [0, 4, 0], sizes = [2, 1, 128], strides = [1, 1, 1]} : vector<2x8x128xf32> to vector<2x1x128xf32>
    %193 = vector.shape_cast %192 : vector<2x1x128xf32> to vector<2x128xf32>
    %194 = vector.extract_strided_slice %193 {offsets = [0, 0], sizes = [2, 64], strides = [1, 1]} : vector<2x128xf32> to vector<2x64xf32>
    %195 = vector.extract_strided_slice %191 {offsets = [0, 0], sizes = [2, 64], strides = [1, 1]} : vector<2x384xf32> to vector<2x64xf32>
    %196 = arith.addf %194, %195 : vector<2x64xf32>
    %197 = arith.negf %196 : vector<2x64xf32>
    %198 = math.exp %197 : vector<2x64xf32>
    %cst_31 = arith.constant 1.000000e+00 : f32
    %199 = vector.broadcast %cst_31 : f32 to vector<2x64xf32>
    %200 = arith.addf %199, %198 : vector<2x64xf32>
    %201 = arith.divf %199, %200 : vector<2x64xf32>
    %202 = vector.extract_strided_slice %193 {offsets = [0, 64], sizes = [2, 32], strides = [1, 1]} : vector<2x128xf32> to vector<2x32xf32>
    %203 = vector.extract_strided_slice %201 {offsets = [0, 0], sizes = [2, 32], strides = [1, 1]} : vector<2x64xf32> to vector<2x32xf32>
    %204 = vector.extract_strided_slice %191 {offsets = [0, 64], sizes = [2, 32], strides = [1, 1]} : vector<2x384xf32> to vector<2x32xf32>
    %205 = arith.mulf %203, %204 : vector<2x32xf32>
    %206 = arith.addf %202, %205 : vector<2x32xf32>
    %207 = math.tanh %206 : vector<2x32xf32>
    %208 = vector.extract_strided_slice %201 {offsets = [0, 32], sizes = [2, 32], strides = [1, 1]} : vector<2x64xf32> to vector<2x32xf32>
    %cst_32 = arith.constant 1.000000e+00 : f32
    %209 = vector.broadcast %cst_32 : f32 to vector<2x32xf32>
    %210 = arith.subf %209, %208 : vector<2x32xf32>
    %211 = arith.mulf %210, %207 : vector<2x32xf32>
    %212 = vector.extract_strided_slice %201 {offsets = [0, 32], sizes = [2, 32], strides = [1, 1]} : vector<2x64xf32> to vector<2x32xf32>
    %213 = arith.mulf %212, %165 : vector<2x32xf32>
    %214 = arith.addf %211, %213 : vector<2x32xf32>
    %215 = vector.extract_strided_slice %191 {offsets = [0, 128], sizes = [2, 96], strides = [1, 1]} : vector<2x384xf32> to vector<2x96xf32>
    %216 = vector.extract_strided_slice %191 {offsets = [0, 256], sizes = [2, 96], strides = [1, 1]} : vector<2x384xf32> to vector<2x96xf32>
    %217 = vector.extract_strided_slice %215 {offsets = [0, 0], sizes = [2, 64], strides = [1, 1]} : vector<2x96xf32> to vector<2x64xf32>
    %218 = vector.extract_strided_slice %216 {offsets = [0, 0], sizes = [2, 64], strides = [1, 1]} : vector<2x96xf32> to vector<2x64xf32>
    %219 = arith.addf %217, %218 : vector<2x64xf32>
    %220 = arith.negf %219 : vector<2x64xf32>
    %221 = math.exp %220 : vector<2x64xf32>
    %cst_33 = arith.constant 1.000000e+00 : f32
    %222 = vector.broadcast %cst_33 : f32 to vector<2x64xf32>
    %223 = arith.addf %222, %221 : vector<2x64xf32>
    %224 = arith.divf %222, %223 : vector<2x64xf32>
    %225 = vector.extract_strided_slice %215 {offsets = [0, 64], sizes = [2, 32], strides = [1, 1]} : vector<2x96xf32> to vector<2x32xf32>
    %226 = vector.extract_strided_slice %224 {offsets = [0, 0], sizes = [2, 32], strides = [1, 1]} : vector<2x64xf32> to vector<2x32xf32>
    %227 = vector.extract_strided_slice %216 {offsets = [0, 64], sizes = [2, 32], strides = [1, 1]} : vector<2x96xf32> to vector<2x32xf32>
    %228 = arith.mulf %226, %227 : vector<2x32xf32>
    %229 = arith.addf %225, %228 : vector<2x32xf32>
    %230 = math.tanh %229 : vector<2x32xf32>
    %231 = vector.extract_strided_slice %224 {offsets = [0, 32], sizes = [2, 32], strides = [1, 1]} : vector<2x64xf32> to vector<2x32xf32>
    %cst_34 = arith.constant 1.000000e+00 : f32
    %232 = vector.broadcast %cst_34 : f32 to vector<2x32xf32>
    %233 = arith.subf %232, %231 : vector<2x32xf32>
    %234 = arith.mulf %233, %230 : vector<2x32xf32>
    %235 = vector.extract_strided_slice %224 {offsets = [0, 32], sizes = [2, 32], strides = [1, 1]} : vector<2x64xf32> to vector<2x32xf32>
    %236 = arith.mulf %235, %188 : vector<2x32xf32>
    %237 = arith.addf %234, %236 : vector<2x32xf32>
    %238 = tpu.concatenate %214, %237 in 1 : vector<2x32xf32>, vector<2x32xf32> -> vector<2x64xf32>
    %cst_35 = arith.constant dense<0.000000e+00> : vector<2x384xf32>
    %239 = tpu.matmul %238, %8, %cst_35 {dimension_numbers = #tpu.dot_dimension_numbers<[1], [0], [0], [1], [0, 0, 1, 1], [], []>} : vector<2x64xf32>, vector<64x384xf32>, vector<2x384xf32> -> vector<2x384xf32>
    %240 = arith.addf %239, %11 : vector<2x384xf32>
    %241 = vector.extract_strided_slice %7 {offsets = [0, 5, 0], sizes = [2, 1, 128], strides = [1, 1, 1]} : vector<2x8x128xf32> to vector<2x1x128xf32>
    %242 = vector.shape_cast %241 : vector<2x1x128xf32> to vector<2x128xf32>
    %243 = vector.extract_strided_slice %242 {offsets = [0, 0], sizes = [2, 64], strides = [1, 1]} : vector<2x128xf32> to vector<2x64xf32>
    %244 = vector.extract_strided_slice %240 {offsets = [0, 0], sizes = [2, 64], strides = [1, 1]} : vector<2x384xf32> to vector<2x64xf32>
    %245 = arith.addf %243, %244 : vector<2x64xf32>
    %246 = arith.negf %245 : vector<2x64xf32>
    %247 = math.exp %246 : vector<2x64xf32>
    %cst_36 = arith.constant 1.000000e+00 : f32
    %248 = vector.broadcast %cst_36 : f32 to vector<2x64xf32>
    %249 = arith.addf %248, %247 : vector<2x64xf32>
    %250 = arith.divf %248, %249 : vector<2x64xf32>
    %251 = vector.extract_strided_slice %242 {offsets = [0, 64], sizes = [2, 32], strides = [1, 1]} : vector<2x128xf32> to vector<2x32xf32>
    %252 = vector.extract_strided_slice %250 {offsets = [0, 0], sizes = [2, 32], strides = [1, 1]} : vector<2x64xf32> to vector<2x32xf32>
    %253 = vector.extract_strided_slice %240 {offsets = [0, 64], sizes = [2, 32], strides = [1, 1]} : vector<2x384xf32> to vector<2x32xf32>
    %254 = arith.mulf %252, %253 : vector<2x32xf32>
    %255 = arith.addf %251, %254 : vector<2x32xf32>
    %256 = math.tanh %255 : vector<2x32xf32>
    %257 = vector.extract_strided_slice %250 {offsets = [0, 32], sizes = [2, 32], strides = [1, 1]} : vector<2x64xf32> to vector<2x32xf32>
    %cst_37 = arith.constant 1.000000e+00 : f32
    %258 = vector.broadcast %cst_37 : f32 to vector<2x32xf32>
    %259 = arith.subf %258, %257 : vector<2x32xf32>
    %260 = arith.mulf %259, %256 : vector<2x32xf32>
    %261 = vector.extract_strided_slice %250 {offsets = [0, 32], sizes = [2, 32], strides = [1, 1]} : vector<2x64xf32> to vector<2x32xf32>
    %262 = arith.mulf %261, %214 : vector<2x32xf32>
    %263 = arith.addf %260, %262 : vector<2x32xf32>
    %264 = vector.extract_strided_slice %240 {offsets = [0, 128], sizes = [2, 96], strides = [1, 1]} : vector<2x384xf32> to vector<2x96xf32>
    %265 = vector.extract_strided_slice %240 {offsets = [0, 256], sizes = [2, 96], strides = [1, 1]} : vector<2x384xf32> to vector<2x96xf32>
    %266 = vector.extract_strided_slice %264 {offsets = [0, 0], sizes = [2, 64], strides = [1, 1]} : vector<2x96xf32> to vector<2x64xf32>
    %267 = vector.extract_strided_slice %265 {offsets = [0, 0], sizes = [2, 64], strides = [1, 1]} : vector<2x96xf32> to vector<2x64xf32>
    %268 = arith.addf %266, %267 : vector<2x64xf32>
    %269 = arith.negf %268 : vector<2x64xf32>
    %270 = math.exp %269 : vector<2x64xf32>
    %cst_38 = arith.constant 1.000000e+00 : f32
    %271 = vector.broadcast %cst_38 : f32 to vector<2x64xf32>
    %272 = arith.addf %271, %270 : vector<2x64xf32>
    %273 = arith.divf %271, %272 : vector<2x64xf32>
    %274 = vector.extract_strided_slice %264 {offsets = [0, 64], sizes = [2, 32], strides = [1, 1]} : vector<2x96xf32> to vector<2x32xf32>
    %275 = vector.extract_strided_slice %273 {offsets = [0, 0], sizes = [2, 32], strides = [1, 1]} : vector<2x64xf32> to vector<2x32xf32>
    %276 = vector.extract_strided_slice %265 {offsets = [0, 64], sizes = [2, 32], strides = [1, 1]} : vector<2x96xf32> to vector<2x32xf32>
    %277 = arith.mulf %275, %276 : vector<2x32xf32>
    %278 = arith.addf %274, %277 : vector<2x32xf32>
    %279 = math.tanh %278 : vector<2x32xf32>
    %280 = vector.extract_strided_slice %273 {offsets = [0, 32], sizes = [2, 32], strides = [1, 1]} : vector<2x64xf32> to vector<2x32xf32>
    %cst_39 = arith.constant 1.000000e+00 : f32
    %281 = vector.broadcast %cst_39 : f32 to vector<2x32xf32>
    %282 = arith.subf %281, %280 : vector<2x32xf32>
    %283 = arith.mulf %282, %279 : vector<2x32xf32>
    %284 = vector.extract_strided_slice %273 {offsets = [0, 32], sizes = [2, 32], strides = [1, 1]} : vector<2x64xf32> to vector<2x32xf32>
    %285 = arith.mulf %284, %237 : vector<2x32xf32>
    %286 = arith.addf %283, %285 : vector<2x32xf32>
    %287 = tpu.concatenate %263, %286 in 1 : vector<2x32xf32>, vector<2x32xf32> -> vector<2x64xf32>
    %cst_40 = arith.constant dense<0.000000e+00> : vector<2x384xf32>
    %288 = tpu.matmul %287, %8, %cst_40 {dimension_numbers = #tpu.dot_dimension_numbers<[1], [0], [0], [1], [0, 0, 1, 1], [], []>} : vector<2x64xf32>, vector<64x384xf32>, vector<2x384xf32> -> vector<2x384xf32>
    %289 = arith.addf %288, %11 : vector<2x384xf32>
    %290 = vector.extract_strided_slice %7 {offsets = [0, 6, 0], sizes = [2, 1, 128], strides = [1, 1, 1]} : vector<2x8x128xf32> to vector<2x1x128xf32>
    %291 = vector.shape_cast %290 : vector<2x1x128xf32> to vector<2x128xf32>
    %292 = vector.extract_strided_slice %291 {offsets = [0, 0], sizes = [2, 64], strides = [1, 1]} : vector<2x128xf32> to vector<2x64xf32>
    %293 = vector.extract_strided_slice %289 {offsets = [0, 0], sizes = [2, 64], strides = [1, 1]} : vector<2x384xf32> to vector<2x64xf32>
    %294 = arith.addf %292, %293 : vector<2x64xf32>
    %295 = arith.negf %294 : vector<2x64xf32>
    %296 = math.exp %295 : vector<2x64xf32>
    %cst_41 = arith.constant 1.000000e+00 : f32
    %297 = vector.broadcast %cst_41 : f32 to vector<2x64xf32>
    %298 = arith.addf %297, %296 : vector<2x64xf32>
    %299 = arith.divf %297, %298 : vector<2x64xf32>
    %300 = vector.extract_strided_slice %291 {offsets = [0, 64], sizes = [2, 32], strides = [1, 1]} : vector<2x128xf32> to vector<2x32xf32>
    %301 = vector.extract_strided_slice %299 {offsets = [0, 0], sizes = [2, 32], strides = [1, 1]} : vector<2x64xf32> to vector<2x32xf32>
    %302 = vector.extract_strided_slice %289 {offsets = [0, 64], sizes = [2, 32], strides = [1, 1]} : vector<2x384xf32> to vector<2x32xf32>
    %303 = arith.mulf %301, %302 : vector<2x32xf32>
    %304 = arith.addf %300, %303 : vector<2x32xf32>
    %305 = math.tanh %304 : vector<2x32xf32>
    %306 = vector.extract_strided_slice %299 {offsets = [0, 32], sizes = [2, 32], strides = [1, 1]} : vector<2x64xf32> to vector<2x32xf32>
    %cst_42 = arith.constant 1.000000e+00 : f32
    %307 = vector.broadcast %cst_42 : f32 to vector<2x32xf32>
    %308 = arith.subf %307, %306 : vector<2x32xf32>
    %309 = arith.mulf %308, %305 : vector<2x32xf32>
    %310 = vector.extract_strided_slice %299 {offsets = [0, 32], sizes = [2, 32], strides = [1, 1]} : vector<2x64xf32> to vector<2x32xf32>
    %311 = arith.mulf %310, %263 : vector<2x32xf32>
    %312 = arith.addf %309, %311 : vector<2x32xf32>
    %313 = vector.extract_strided_slice %289 {offsets = [0, 128], sizes = [2, 96], strides = [1, 1]} : vector<2x384xf32> to vector<2x96xf32>
    %314 = vector.extract_strided_slice %289 {offsets = [0, 256], sizes = [2, 96], strides = [1, 1]} : vector<2x384xf32> to vector<2x96xf32>
    %315 = vector.extract_strided_slice %313 {offsets = [0, 0], sizes = [2, 64], strides = [1, 1]} : vector<2x96xf32> to vector<2x64xf32>
    %316 = vector.extract_strided_slice %314 {offsets = [0, 0], sizes = [2, 64], strides = [1, 1]} : vector<2x96xf32> to vector<2x64xf32>
    %317 = arith.addf %315, %316 : vector<2x64xf32>
    %318 = arith.negf %317 : vector<2x64xf32>
    %319 = math.exp %318 : vector<2x64xf32>
    %cst_43 = arith.constant 1.000000e+00 : f32
    %320 = vector.broadcast %cst_43 : f32 to vector<2x64xf32>
    %321 = arith.addf %320, %319 : vector<2x64xf32>
    %322 = arith.divf %320, %321 : vector<2x64xf32>
    %323 = vector.extract_strided_slice %313 {offsets = [0, 64], sizes = [2, 32], strides = [1, 1]} : vector<2x96xf32> to vector<2x32xf32>
    %324 = vector.extract_strided_slice %322 {offsets = [0, 0], sizes = [2, 32], strides = [1, 1]} : vector<2x64xf32> to vector<2x32xf32>
    %325 = vector.extract_strided_slice %314 {offsets = [0, 64], sizes = [2, 32], strides = [1, 1]} : vector<2x96xf32> to vector<2x32xf32>
    %326 = arith.mulf %324, %325 : vector<2x32xf32>
    %327 = arith.addf %323, %326 : vector<2x32xf32>
    %328 = math.tanh %327 : vector<2x32xf32>
    %329 = vector.extract_strided_slice %322 {offsets = [0, 32], sizes = [2, 32], strides = [1, 1]} : vector<2x64xf32> to vector<2x32xf32>
    %cst_44 = arith.constant 1.000000e+00 : f32
    %330 = vector.broadcast %cst_44 : f32 to vector<2x32xf32>
    %331 = arith.subf %330, %329 : vector<2x32xf32>
    %332 = arith.mulf %331, %328 : vector<2x32xf32>
    %333 = vector.extract_strided_slice %322 {offsets = [0, 32], sizes = [2, 32], strides = [1, 1]} : vector<2x64xf32> to vector<2x32xf32>
    %334 = arith.mulf %333, %286 : vector<2x32xf32>
    %335 = arith.addf %332, %334 : vector<2x32xf32>
    %336 = tpu.concatenate %312, %335 in 1 : vector<2x32xf32>, vector<2x32xf32> -> vector<2x64xf32>
    %cst_45 = arith.constant dense<0.000000e+00> : vector<2x384xf32>
    %337 = tpu.matmul %336, %8, %cst_45 {dimension_numbers = #tpu.dot_dimension_numbers<[1], [0], [0], [1], [0, 0, 1, 1], [], []>} : vector<2x64xf32>, vector<64x384xf32>, vector<2x384xf32> -> vector<2x384xf32>
    %338 = arith.addf %337, %11 : vector<2x384xf32>
    %339 = vector.extract_strided_slice %7 {offsets = [0, 7, 0], sizes = [2, 1, 128], strides = [1, 1, 1]} : vector<2x8x128xf32> to vector<2x1x128xf32>
    %340 = vector.shape_cast %339 : vector<2x1x128xf32> to vector<2x128xf32>
    %341 = vector.extract_strided_slice %340 {offsets = [0, 0], sizes = [2, 64], strides = [1, 1]} : vector<2x128xf32> to vector<2x64xf32>
    %342 = vector.extract_strided_slice %338 {offsets = [0, 0], sizes = [2, 64], strides = [1, 1]} : vector<2x384xf32> to vector<2x64xf32>
    %343 = arith.addf %341, %342 : vector<2x64xf32>
    %344 = arith.negf %343 : vector<2x64xf32>
    %345 = math.exp %344 : vector<2x64xf32>
    %cst_46 = arith.constant 1.000000e+00 : f32
    %346 = vector.broadcast %cst_46 : f32 to vector<2x64xf32>
    %347 = arith.addf %346, %345 : vector<2x64xf32>
    %348 = arith.divf %346, %347 : vector<2x64xf32>
    %349 = vector.extract_strided_slice %340 {offsets = [0, 64], sizes = [2, 32], strides = [1, 1]} : vector<2x128xf32> to vector<2x32xf32>
    %350 = vector.extract_strided_slice %348 {offsets = [0, 0], sizes = [2, 32], strides = [1, 1]} : vector<2x64xf32> to vector<2x32xf32>
    %351 = vector.extract_strided_slice %338 {offsets = [0, 64], sizes = [2, 32], strides = [1, 1]} : vector<2x384xf32> to vector<2x32xf32>
    %352 = arith.mulf %350, %351 : vector<2x32xf32>
    %353 = arith.addf %349, %352 : vector<2x32xf32>
    %354 = math.tanh %353 : vector<2x32xf32>
    %355 = vector.extract_strided_slice %348 {offsets = [0, 32], sizes = [2, 32], strides = [1, 1]} : vector<2x64xf32> to vector<2x32xf32>
    %cst_47 = arith.constant 1.000000e+00 : f32
    %356 = vector.broadcast %cst_47 : f32 to vector<2x32xf32>
    %357 = arith.subf %356, %355 : vector<2x32xf32>
    %358 = arith.mulf %357, %354 : vector<2x32xf32>
    %359 = vector.extract_strided_slice %348 {offsets = [0, 32], sizes = [2, 32], strides = [1, 1]} : vector<2x64xf32> to vector<2x32xf32>
    %360 = arith.mulf %359, %312 : vector<2x32xf32>
    %361 = arith.addf %358, %360 : vector<2x32xf32>
    %362 = vector.extract_strided_slice %338 {offsets = [0, 128], sizes = [2, 96], strides = [1, 1]} : vector<2x384xf32> to vector<2x96xf32>
    %363 = vector.extract_strided_slice %338 {offsets = [0, 256], sizes = [2, 96], strides = [1, 1]} : vector<2x384xf32> to vector<2x96xf32>
    %364 = vector.extract_strided_slice %362 {offsets = [0, 0], sizes = [2, 64], strides = [1, 1]} : vector<2x96xf32> to vector<2x64xf32>
    %365 = vector.extract_strided_slice %363 {offsets = [0, 0], sizes = [2, 64], strides = [1, 1]} : vector<2x96xf32> to vector<2x64xf32>
    %366 = arith.addf %364, %365 : vector<2x64xf32>
    %367 = arith.negf %366 : vector<2x64xf32>
    %368 = math.exp %367 : vector<2x64xf32>
    %cst_48 = arith.constant 1.000000e+00 : f32
    %369 = vector.broadcast %cst_48 : f32 to vector<2x64xf32>
    %370 = arith.addf %369, %368 : vector<2x64xf32>
    %371 = arith.divf %369, %370 : vector<2x64xf32>
    %372 = vector.extract_strided_slice %362 {offsets = [0, 64], sizes = [2, 32], strides = [1, 1]} : vector<2x96xf32> to vector<2x32xf32>
    %373 = vector.extract_strided_slice %371 {offsets = [0, 0], sizes = [2, 32], strides = [1, 1]} : vector<2x64xf32> to vector<2x32xf32>
    %374 = vector.extract_strided_slice %363 {offsets = [0, 64], sizes = [2, 32], strides = [1, 1]} : vector<2x96xf32> to vector<2x32xf32>
    %375 = arith.mulf %373, %374 : vector<2x32xf32>
    %376 = arith.addf %372, %375 : vector<2x32xf32>
    %377 = math.tanh %376 : vector<2x32xf32>
    %378 = vector.extract_strided_slice %371 {offsets = [0, 32], sizes = [2, 32], strides = [1, 1]} : vector<2x64xf32> to vector<2x32xf32>
    %cst_49 = arith.constant 1.000000e+00 : f32
    %379 = vector.broadcast %cst_49 : f32 to vector<2x32xf32>
    %380 = arith.subf %379, %378 : vector<2x32xf32>
    %381 = arith.mulf %380, %377 : vector<2x32xf32>
    %382 = vector.extract_strided_slice %371 {offsets = [0, 32], sizes = [2, 32], strides = [1, 1]} : vector<2x64xf32> to vector<2x32xf32>
    %383 = arith.mulf %382, %335 : vector<2x32xf32>
    %384 = arith.addf %381, %383 : vector<2x32xf32>
    %385 = tpu.concatenate %361, %384 in 1 : vector<2x32xf32>, vector<2x32xf32> -> vector<2x64xf32>
    %cst_50 = arith.constant dense<0.000000e+00> : vector<2x384xf32>
    %386 = tpu.matmul %385, %8, %cst_50 {dimension_numbers = #tpu.dot_dimension_numbers<[1], [0], [0], [1], [0, 0, 1, 1], [], []>} : vector<2x64xf32>, vector<64x384xf32>, vector<2x384xf32> -> vector<2x384xf32>
    %387 = arith.addf %386, %11 : vector<2x384xf32>
    %388 = vector.extract_strided_slice %387 {offsets = [0, 128], sizes = [2, 96], strides = [1, 1]} : vector<2x384xf32> to vector<2x96xf32>
    %389 = vector.extract_strided_slice %387 {offsets = [0, 256], sizes = [2, 96], strides = [1, 1]} : vector<2x384xf32> to vector<2x96xf32>
    %390 = vector.extract_strided_slice %388 {offsets = [0, 0], sizes = [2, 64], strides = [1, 1]} : vector<2x96xf32> to vector<2x64xf32>
    %391 = vector.extract_strided_slice %389 {offsets = [0, 0], sizes = [2, 64], strides = [1, 1]} : vector<2x96xf32> to vector<2x64xf32>
    %392 = arith.addf %390, %391 : vector<2x64xf32>
    %393 = arith.negf %392 : vector<2x64xf32>
    %394 = math.exp %393 : vector<2x64xf32>
    %cst_51 = arith.constant 1.000000e+00 : f32
    %395 = vector.broadcast %cst_51 : f32 to vector<2x64xf32>
    %396 = arith.addf %395, %394 : vector<2x64xf32>
    %397 = arith.divf %395, %396 : vector<2x64xf32>
    %398 = vector.extract_strided_slice %388 {offsets = [0, 64], sizes = [2, 32], strides = [1, 1]} : vector<2x96xf32> to vector<2x32xf32>
    %399 = vector.extract_strided_slice %397 {offsets = [0, 0], sizes = [2, 32], strides = [1, 1]} : vector<2x64xf32> to vector<2x32xf32>
    %400 = vector.extract_strided_slice %389 {offsets = [0, 64], sizes = [2, 32], strides = [1, 1]} : vector<2x96xf32> to vector<2x32xf32>
    %401 = arith.mulf %399, %400 : vector<2x32xf32>
    %402 = arith.addf %398, %401 : vector<2x32xf32>
    %403 = math.tanh %402 : vector<2x32xf32>
    %404 = vector.extract_strided_slice %397 {offsets = [0, 32], sizes = [2, 32], strides = [1, 1]} : vector<2x64xf32> to vector<2x32xf32>
    %cst_52 = arith.constant 1.000000e+00 : f32
    %405 = vector.broadcast %cst_52 : f32 to vector<2x32xf32>
    %406 = arith.subf %405, %404 : vector<2x32xf32>
    %407 = arith.mulf %406, %403 : vector<2x32xf32>
    %408 = vector.extract_strided_slice %397 {offsets = [0, 32], sizes = [2, 32], strides = [1, 1]} : vector<2x64xf32> to vector<2x32xf32>
    %409 = arith.mulf %408, %384 : vector<2x32xf32>
    %410 = arith.addf %407, %409 : vector<2x32xf32>
    %411 = vector.shape_cast %90 : vector<2x32xf32> to vector<1x2x32xf32>
    %412 = vector.shape_cast %139 : vector<2x32xf32> to vector<1x2x32xf32>
    %413 = vector.shape_cast %188 : vector<2x32xf32> to vector<1x2x32xf32>
    %414 = vector.shape_cast %237 : vector<2x32xf32> to vector<1x2x32xf32>
    %415 = vector.shape_cast %286 : vector<2x32xf32> to vector<1x2x32xf32>
    %416 = vector.shape_cast %335 : vector<2x32xf32> to vector<1x2x32xf32>
    %417 = vector.shape_cast %384 : vector<2x32xf32> to vector<1x2x32xf32>
    %418 = vector.shape_cast %410 : vector<2x32xf32> to vector<1x2x32xf32>
    %419 = tpu.concatenate %411, %412, %413, %414, %415, %416, %417, %418 in 0 : vector<1x2x32xf32>, vector<1x2x32xf32>, vector<1x2x32xf32>, vector<1x2x32xf32>, vector<1x2x32xf32>, vector<1x2x32xf32>, vector<1x2x32xf32>, vector<1x2x32xf32> -> vector<8x2x32xf32>
    %420 = vector.shape_cast %419 : vector<8x2x32xf32> to vector<16x32xf32>
    %c88 = arith.constant 88 : index
    %c0_53 = arith.constant 0 : index
    %421 = vector.load %arg2[%c88, %c0_53] : memref<576x384xf32, #tpu.memory_space<vmem>>, vector<32x128xf32>
    %cst_54 = arith.constant dense<0.000000e+00> : vector<16x128xf32>
    %422 = tpu.matmul %420, %421, %cst_54 {dimension_numbers = #tpu.dot_dimension_numbers<[1], [0], [0], [1], [0, 0, 1, 1], [], []>} : vector<16x32xf32>, vector<32x128xf32>, vector<16x128xf32> -> vector<16x128xf32>
    %c120 = arith.constant 120 : index
    %c0_55 = arith.constant 0 : index
    %423 = vector.load %arg2[%c120, %c0_55] : memref<576x384xf32, #tpu.memory_space<vmem>>, vector<1x128xf32>
    %424 = vector.broadcast %423 : vector<1x128xf32> to vector<16x128xf32>
    %425 = arith.addf %422, %424 : vector<16x128xf32>
    %cst_56 = arith.constant 0.000000e+00 : f32
    %426 = vector.broadcast %cst_56 : f32 to vector<16x128xf32>
    %427 = arith.maximumf %425, %426 : vector<16x128xf32>
    %c128 = arith.constant 128 : index
    %c0_57 = arith.constant 0 : index
    %428 = vector.load %arg2[%c128, %c0_57] : memref<576x384xf32, #tpu.memory_space<vmem>>, vector<128x128xf32>
    %cst_58 = arith.constant dense<0.000000e+00> : vector<16x128xf32>
    %429 = tpu.matmul %427, %428, %cst_58 {dimension_numbers = #tpu.dot_dimension_numbers<[1], [0], [0], [1], [0, 0, 1, 1], [], []>} : vector<16x128xf32>, vector<128x128xf32>, vector<16x128xf32> -> vector<16x128xf32>
    %c256 = arith.constant 256 : index
    %c0_59 = arith.constant 0 : index
    %430 = vector.load %arg2[%c256, %c0_59] : memref<576x384xf32, #tpu.memory_space<vmem>>, vector<1x128xf32>
    %431 = vector.broadcast %430 : vector<1x128xf32> to vector<16x128xf32>
    %432 = arith.addf %429, %431 : vector<16x128xf32>
    %433 = vector.shape_cast %432 : vector<16x128xf32> to vector<8x2x128xf32>
    %434 = vector.extract_strided_slice %433 {offsets = [0, 0, 0], sizes = [8, 2, 1], strides = [1, 1, 1]} : vector<8x2x128xf32> to vector<8x2x1xf32>
    %cst_60 = arith.constant dense<0xFF800000> : vector<2x1xf32>
    %435 = vector.multi_reduction <maximumf>, %434, %cst_60 [0] : vector<8x2x1xf32> to vector<2x1xf32>
    %436 = vector.shape_cast %435 : vector<2x1xf32> to vector<1x2x1xf32>
    %437 = vector.broadcast %436 : vector<1x2x1xf32> to vector<8x2x1xf32>
    %438 = arith.subf %434, %437 : vector<8x2x1xf32>
    %439 = math.exp %438 : vector<8x2x1xf32>
    %cst_61 = arith.constant dense<0.000000e+00> : vector<2x1xf32>
    %440 = vector.multi_reduction <add>, %439, %cst_61 [0] : vector<8x2x1xf32> to vector<2x1xf32>
    %441 = vector.shape_cast %440 : vector<2x1xf32> to vector<1x2x1xf32>
    %442 = tpu.reciprocal %441 : vector<1x2x1xf32> -> vector<1x2x1xf32>
    %443 = vector.broadcast %442 : vector<1x2x1xf32> to vector<8x2x1xf32>
    %444 = arith.mulf %439, %443 : vector<8x2x1xf32>
    %445 = vector.broadcast %444 : vector<8x2x1xf32> to vector<8x2x32xf32>
    %446 = arith.mulf %445, %419 : vector<8x2x32xf32>
    %cst_62 = arith.constant dense<0.000000e+00> : vector<2x32xf32>
    %447 = vector.multi_reduction <add>, %446, %cst_62 [0] : vector<8x2x32xf32> to vector<2x32xf32>
    %c264 = arith.constant 264 : index
    %c0_63 = arith.constant 0 : index
    %448 = vector.load %arg2[%c264, %c0_63] : memref<576x384xf32, #tpu.memory_space<vmem>>, vector<32x128xf32>
    %cst_64 = arith.constant dense<0.000000e+00> : vector<2x128xf32>
    %449 = tpu.matmul %447, %448, %cst_64 {dimension_numbers = #tpu.dot_dimension_numbers<[1], [0], [0], [1], [0, 0, 1, 1], [], []>} : vector<2x32xf32>, vector<32x128xf32>, vector<2x128xf32> -> vector<2x128xf32>
    %c296 = arith.constant 296 : index
    %c0_65 = arith.constant 0 : index
    %450 = vector.load %arg2[%c296, %c0_65] : memref<576x384xf32, #tpu.memory_space<vmem>>, vector<1x128xf32>
    %451 = vector.broadcast %450 : vector<1x128xf32> to vector<2x128xf32>
    %452 = arith.addf %449, %451 : vector<2x128xf32>
    %cst_66 = arith.constant 0.000000e+00 : f32
    %453 = vector.broadcast %cst_66 : f32 to vector<2x128xf32>
    %454 = arith.maximumf %452, %453 : vector<2x128xf32>
    %c304 = arith.constant 304 : index
    %c0_67 = arith.constant 0 : index
    %455 = vector.load %arg2[%c304, %c0_67] : memref<576x384xf32, #tpu.memory_space<vmem>>, vector<128x128xf32>
    %cst_68 = arith.constant dense<0.000000e+00> : vector<2x128xf32>
    %456 = tpu.matmul %454, %455, %cst_68 {dimension_numbers = #tpu.dot_dimension_numbers<[1], [0], [0], [1], [0, 0, 1, 1], [], []>} : vector<2x128xf32>, vector<128x128xf32>, vector<2x128xf32> -> vector<2x128xf32>
    %c432 = arith.constant 432 : index
    %c0_69 = arith.constant 0 : index
    %457 = vector.load %arg2[%c432, %c0_69] : memref<576x384xf32, #tpu.memory_space<vmem>>, vector<1x128xf32>
    %458 = vector.broadcast %457 : vector<1x128xf32> to vector<2x128xf32>
    %459 = arith.addf %456, %458 : vector<2x128xf32>
    %cst_70 = arith.constant 0.000000e+00 : f32
    %460 = vector.broadcast %cst_70 : f32 to vector<2x128xf32>
    %461 = arith.maximumf %459, %460 : vector<2x128xf32>
    %c440 = arith.constant 440 : index
    %c0_71 = arith.constant 0 : index
    %462 = vector.load %arg2[%c440, %c0_71] : memref<576x384xf32, #tpu.memory_space<vmem>>, vector<128x128xf32>
    %cst_72 = arith.constant dense<0.000000e+00> : vector<2x128xf32>
    %463 = tpu.matmul %461, %462, %cst_72 {dimension_numbers = #tpu.dot_dimension_numbers<[1], [0], [0], [1], [0, 0, 1, 1], [], []>} : vector<2x128xf32>, vector<128x128xf32>, vector<2x128xf32> -> vector<2x128xf32>
    %c568 = arith.constant 568 : index
    %c0_73 = arith.constant 0 : index
    %464 = vector.load %arg2[%c568, %c0_73] : memref<576x384xf32, #tpu.memory_space<vmem>>, vector<1x128xf32>
    %465 = vector.broadcast %464 : vector<1x128xf32> to vector<2x128xf32>
    %466 = arith.addf %463, %465 : vector<2x128xf32>
    %467 = vector.extract_strided_slice %466 {offsets = [0, 0], sizes = [2, 4], strides = [1, 1]} : vector<2x128xf32> to vector<2x4xf32>
    %cst_74 = arith.constant dense<0xFF800000> : vector<2xf32>
    %468 = vector.multi_reduction <maximumf>, %467, %cst_74 [1] : vector<2x4xf32> to vector<2xf32>
    %469 = vector.shape_cast %468 : vector<2xf32> to vector<2x1xf32>
    %470 = vector.broadcast %469 : vector<2x1xf32> to vector<2x4xf32>
    %471 = arith.subf %467, %470 : vector<2x4xf32>
    %472 = math.exp %471 : vector<2x4xf32>
    %cst_75 = arith.constant dense<0.000000e+00> : vector<2xf32>
    %473 = vector.multi_reduction <add>, %472, %cst_75 [1] : vector<2x4xf32> to vector<2xf32>
    %474 = vector.shape_cast %473 : vector<2xf32> to vector<2x1xf32>
    %475 = tpu.reciprocal %474 : vector<2x1xf32> -> vector<2x1xf32>
    %476 = vector.broadcast %475 : vector<2x1xf32> to vector<2x4xf32>
    %477 = arith.mulf %472, %476 : vector<2x4xf32>
    %478 = vector.extract_strided_slice %466 {offsets = [0, 4], sizes = [2, 1], strides = [1, 1]} : vector<2x128xf32> to vector<2x1xf32>
    %479 = arith.negf %478 : vector<2x1xf32>
    %480 = math.exp %479 : vector<2x1xf32>
    %cst_76 = arith.constant 1.000000e+00 : f32
    %481 = vector.broadcast %cst_76 : f32 to vector<2x1xf32>
    %482 = arith.addf %481, %480 : vector<2x1xf32>
    %483 = arith.divf %481, %482 : vector<2x1xf32>
    %c0_77 = arith.constant 0 : index
    %c0_78 = arith.constant 0 : index
    %484 = vector.load %arg3[%c0_77, %c0_78] : memref<2x4xf32, #tpu.memory_space<vmem>>, vector<2x4xf32>
    tpu.vector_store %arg3[%c0_77, %c0_78], %477 {strides = array<i32>} : memref<2x4xf32, #tpu.memory_space<vmem>>, vector<2x4xf32>,
    %c0_79 = arith.constant 0 : index
    %c0_80 = arith.constant 0 : index
    %c0_81 = arith.constant 0 : index
    %485 = vector.load %arg4[%c0_79, %c0_80, %c0_81] : memref<2x2x32xf32, #tpu.memory_space<vmem>>, vector<1x2x32xf32>
    %486 = vector.shape_cast %485 : vector<1x2x32xf32> to vector<2x32xf32>
    %487 = vector.shape_cast %361 : vector<2x32xf32> to vector<1x2x32xf32>
    tpu.vector_store %arg4[%c0_79, %c0_80, %c0_81], %487 {strides = array<i32>} : memref<2x2x32xf32, #tpu.memory_space<vmem>>, vector<1x2x32xf32>,
    %c1_82 = arith.constant 1 : index
    %c0_83 = arith.constant 0 : index
    %c0_84 = arith.constant 0 : index
    %488 = vector.load %arg4[%c1_82, %c0_83, %c0_84] : memref<2x2x32xf32, #tpu.memory_space<vmem>>, vector<1x2x32xf32>
    %489 = vector.shape_cast %488 : vector<1x2x32xf32> to vector<2x32xf32>
    %490 = vector.shape_cast %410 : vector<2x32xf32> to vector<1x2x32xf32>
    tpu.vector_store %arg4[%c1_82, %c0_83, %c0_84], %490 {strides = array<i32>} : memref<2x2x32xf32, #tpu.memory_space<vmem>>, vector<1x2x32xf32>,
    %c0_85 = arith.constant 0 : index
    %c0_86 = arith.constant 0 : index
    %491 = vector.load %arg5[%c0_85, %c0_86] : memref<2x32xf32, #tpu.memory_space<vmem>>, vector<2x32xf32>
    tpu.vector_store %arg5[%c0_85, %c0_86], %447 {strides = array<i32>} : memref<2x32xf32, #tpu.memory_space<vmem>>, vector<2x32xf32>,
    %c0_87 = arith.constant 0 : index
    %c0_88 = arith.constant 0 : index
    %492 = vector.load %arg6[%c0_87, %c0_88] : memref<2x1xf32, #tpu.memory_space<vmem>>, vector<2x1xf32>
    tpu.vector_store %arg6[%c0_87, %c0_88], %483 {strides = array<i32>} : memref<2x1xf32, #tpu.memory_space<vmem>>, vector<2x1xf32>,
    return
  }
}

</mosaic_0001>

<llo_original>
// kernel: flood_gru_actor_forward.1
$region0: #{flood_gru_actor_forward.1}
  #allocation0 [shape = 'u32[]', space=smem, size = 0x4, offset = 0x4, fixed_abs, tag = 'smem constant byte address 0x4 - core index']
  #allocation1 [shape = 'u32[72,128]{1,0:T(1,128)}', space=vmem, size = 0x9000, scoped, tag = 'internal scratch']
  %s0 = inlined_call_operand.hbm [shape: f32[2,8,8], index: 0, kind: input, shape index: {}]
  %s1 = inlined_call_operand.hbm [shape: f32[2,2,32], index: 1, kind: input, shape index: {}]
  %s2 = inlined_call_operand.hbm [shape: f32[576,384], index: 2, kind: input, shape index: {}]
  %s3 = inlined_call_operand.hbm [shape: f32[2,4], index: 3, kind: output, shape index: {0}]
  %s4 = inlined_call_operand.hbm [shape: f32[2,2,32], index: 4, kind: output, shape index: {1}]
  %s5 = inlined_call_operand.hbm [shape: f32[2,32], index: 5, kind: output, shape index: {2}]
  %s6 = inlined_call_operand.vmem [shape: f32[2,1], index: 6, kind: output, shape index: {3}]
  %7 = xla_tuple %s3, %s4, %s5, %s6
  %s8 = sld [smem:[#allocation0]]
  $region58: #{flood_gru_actor_forward.1} parent=0
    _
  %s10 = ssub.s32 1, %s8
  %s11 = scalar_select 0, %s10, %s8
  $region1: #{flood_gru_actor_forward.1} parent=0
    #allocation2 [shape = 'u8[8192]{0}', space=vmem, size = 0x2000, scoped, tag = 'input window, operand 0, single buffered']
    #allocation3 [shape = 's32[1]{0}', space=sflag, size = 0x4, scoped, tag = 'scoped memory for flood_gru_actor_forward.1']
    #allocation4 [shape = 's32[1]{0}', space=sflag, size = 0x4, scoped, tag = 'scoped memory for flood_gru_actor_forward.1']
    #allocation5 [shape = 'u8[2048]{0}', space=vmem, size = 0x800, scoped, tag = 'input window, operand 1, single buffered']
    #allocation6 [shape = 's32[1]{0}', space=sflag, size = 0x4, scoped, tag = 'scoped memory for flood_gru_actor_forward.1']
    #allocation7 [shape = 'u8[884736]{0}', space=vmem, size = 0xd8000, scoped, tag = 'input window, operand 2, single buffered']
    #allocation8 [shape = 'u8[1024]{0}', space=vmem, size = 0x400, scoped, tag = 'output window, operand 0, single buffered']
    #allocation9 [shape = 'u8[2048]{0}', space=vmem, size = 0x800, scoped, tag = 'output window, operand 1, single buffered']
    #allocation10 [shape = 's32[1]{0}', space=sflag, size = 0x4, scoped, tag = 'scoped memory for flood_gru_actor_forward.1']
    #allocation11 [shape = 'u8[1024]{0}', space=vmem, size = 0x400, scoped, tag = 'output window, operand 2, single buffered']
    %12 = vsyncpa [#allocation3], 0
    %13 = vsyncpa [#allocation6], 0
    %14 = vsyncpa [#allocation4], 0
    %15 = vsyncpa [#allocation10], 0
    // Predicated region
    $region2: #{flood_gru_actor_forward.1} parent=1 // pred_check
      _
    $region3: #{flood_gru_actor_forward.1} parent=1 // pred_check_branch
      %17 = sbr.rel (0) target = $region5
    $region4: #{flood_gru_actor_forward.1} parent=1 // pred_region
      %19 = vsyncadd [#allocation3], 0
      %s20 = sshll.u32 %s0, 4
      %s21 = int_to_ptr.hbm [resolvable:$true] %s20
      %s22 = sshll.u32 [#allocation2], 4
      %s23 = int_to_ptr.vmem [resolvable:$true] %s22
      %28 = dma.hbm_to_vmem [thread:$0]  %s21, 256, %s23, [#allocation3], 128, 128, 8
    $region5: #{flood_gru_actor_forward.1} parent=1 // pred_fallthru
      _
    // Predicated region
    $region6: #{flood_gru_actor_forward.1} parent=1 // pred_check
      _
    $region7: #{flood_gru_actor_forward.1} parent=1 // pred_check_branch
      %30 = sbr.rel (0) target = $region9
    $region8: #{flood_gru_actor_forward.1} parent=1 // pred_region
      %32 = vsyncadd [#allocation6], 0
      %s33 = sshll.u32 %s1, 4
      %s34 = int_to_ptr.hbm [resolvable:$true] %s33
      %s35 = sshll.u32 [#allocation5], 4
      %s36 = int_to_ptr.vmem [resolvable:$true] %s35
      %41 = dma.hbm_to_vmem [thread:$0]  %s34, 64, %s36, [#allocation6], 32, 32, 2
    $region9: #{flood_gru_actor_forward.1} parent=1 // pred_fallthru
      _
    // Predicated region
    $region10: #{flood_gru_actor_forward.1} parent=1 // pred_check
      _
    $region11: #{flood_gru_actor_forward.1} parent=1 // pred_check_branch
      %43 = sbr.rel (0) target = $region13
    $region12: #{flood_gru_actor_forward.1} parent=1 // pred_region
      %45 = vsyncadd [#allocation6], 0
      %s46 = sshll.u32 %s2, 4
      %s47 = int_to_ptr.hbm [resolvable:$true] %s46
      %s48 = sshll.u32 [#allocation7], 4
      %s49 = int_to_ptr.vmem [resolvable:$true] %s48
      %54 = dma.hbm_to_vmem [thread:$0]  %s47, 27648, %s49, [#allocation6], 384, 384, 24
    $region13: #{flood_gru_actor_forward.1} parent=1 // pred_fallthru
      _
    // Predicated region
    $region14: #{flood_gru_actor_forward.1} parent=1 // pred_check
      _
    $region15: #{flood_gru_actor_forward.1} parent=1 // pred_check_branch
      %56 = sbr.rel (0) target = $region17
    $region16: #{flood_gru_actor_forward.1} parent=1 // pred_region
      %58 = dma.done [#allocation3], 256
    $region17: #{flood_gru_actor_forward.1} parent=1 // pred_fallthru
      _
    // Predicated region
    $region18: #{flood_gru_actor_forward.1} parent=1 // pred_check
      _
    $region19: #{flood_gru_actor_forward.1} parent=1 // pred_check_branch
      %60 = sbr.rel (0) target = $region21
    $region20: #{flood_gru_actor_forward.1} parent=1 // pred_region
      %62 = dma.done [#allocation6], 64
    $region21: #{flood_gru_actor_forward.1} parent=1 // pred_fallthru
      _
    // Predicated region
    $region22: #{flood_gru_actor_forward.1} parent=1 // pred_check
      _
    $region23: #{flood_gru_actor_forward.1} parent=1 // pred_check_branch
      %64 = sbr.rel (0) target = $region25
    $region24: #{flood_gru_actor_forward.1} parent=1 // pred_region
      %66 = dma.done [#allocation6], 27648
    $region25: #{flood_gru_actor_forward.1} parent=1 // pred_fallthru
      _
    %v67 = vld [vmem:[#allocation2] sm:$0xff]
    %v68 = vld [vmem:[#allocation2 + $0x8] sm:$0xff]
    %v69 = vld [vmem:[#allocation7 + $0xd8] sm:$0xff]
    %v70 = vld [vmem:[#allocation7 + $0xf0] ss:$0 sm:$0xff]
    %vm71 = vcmask 64512
    %v73 = vsel %vm71, %v67, 0
    %v76 = vsel %vm71, %v68, 0
    %78 = vmatpush.msra.mxu0 0.0
    %79 = vmatpush.msra.mxu0 0.0
    %80 = vmatpush.msra.mxu0 0.0
    %81 = vmatpush.msra.mxu0 0.0
    %82 = vmatpush.msra.mxu0 0.0
    %83 = vmatpush.msra.mxu0 0.0
    %84 = vmatpush.msra.mxu0 0.0
    %85 = vmatpush.msra.mxu0 0.0
    %86 = vmatpush.msra.mxu0 0.0
    %87 = vmatpush.msra.mxu0 0.0
    %88 = vmatpush.msra.mxu0 0.0
    %89 = vmatpush.msra.mxu0 0.0
    %90 = vmatpush.msra.mxu0 0.0
    %91 = vmatpush.msra.mxu0 0.0
    %92 = vmatpush.msra.mxu0 0.0
    %93 = vmatpush.msra.mxu0 %v69
    %94 = vmatmul.f32.gmra.mxu0 %v73
    %v95 = vpop.f32.mrf.mxu0
    %v96 = vadd.f32 %v70, %v95
    %97 = vmatmul.f32.gmra.mxu0 %v76
    %v98 = vpop.f32.mrf.mxu0
    %v99 = vadd.f32 %v70, %v98
    %100 = vdwg.mxu0
    %v101 = vld [vmem:[#allocation7] sm:$0xff]
    %v102 = vld [vmem:[#allocation7 + $0x8] sm:$0xff]
    %v103 = vld [vmem:[#allocation7 + $0x10] sm:$0xff]
    %v104 = vld [vmem:[#allocation7 + $0x18] sm:$0xff]
    %v105 = vld [vmem:[#allocation7 + $0x20] sm:$0xff]
    %v106 = vld [vmem:[#allocation7 + $0x28] sm:$0xff]
    %v107 = vld [vmem:[#allocation7 + $0x30] sm:$0xff]
    %v108 = vld [vmem:[#allocation7 + $0x38] sm:$0xff]
    %v109 = vld [vmem:[#allocation7 + $0x40] sm:$0xff]
    %v110 = vld [vmem:[#allocation7 + $0x48] sm:$0xff]
    %v111 = vld [vmem:[#allocation7 + $0x50] sm:$0xff]
    %v112 = vld [vmem:[#allocation7 + $0x58] sm:$0xff]
    %v113 = vld [vmem:[#allocation7 + $0x60] sm:$0xff]
    %v114 = vld [vmem:[#allocation7 + $0x68] sm:$0xff]
    %v115 = vld [vmem:[#allocation7 + $0x70] sm:$0xff]
    %v116 = vld [vmem:[#allocation7 + $0x78] sm:$0xff]
    %v117 = vld [vmem:[#allocation7 + $0x80] sm:$0xff]
    %v118 = vld [vmem:[#allocation7 + $0x88] sm:$0xff]
    %v119 = vld [vmem:[#allocation7 + $0x90] sm:$0xff]
    %v120 = vld [vmem:[#allocation7 + $0x98] sm:$0xff]
    %v121 = vld [vmem:[#allocation7 + $0xa0] sm:$0xff]
    %v122 = vld [vmem:[#allocation7 + $0xa8] sm:$0xff]
    %v123 = vld [vmem:[#allocation7 + $0xb0] sm:$0xff]
    %v124 = vld [vmem:[#allocation7 + $0xb8] sm:$0xff]
    %s125 = scalar_lea.vmem [#allocation7], 192
    %v126 = vld [vmem:[%s125] ss:$8 sm:$0x7]
    %v128 = vperm.slane %v126, 0
    %v129 = vperm.slane %v126, 1
    %v130 = vperm.slane %v126, 2
    %v134 = vld [vmem:[#allocation5] sm:$0x3]
    %s135 = scalar_lea.vmem [#allocation5], 2
    %v136 = vld [vmem:[%s135] sm:$0x3]
    %138 = vrot.lane.b32.xlu0 %v136, 32
    %v139 = vpop.permute.xlu0 %138
    %vm141 = vcmask 261120
    %v142 = vsel %vm141, %v134, %v139
    %vm143 = vcmask 523264
    %v145 = vsel %vm143, %v142, 0
    %147 = vmatpush.msra.mxu0 0.0
    %148 = vmatpush.msra.mxu0 0.0
    %149 = vmatpush.msra.mxu0 0.0
    %150 = vmatpush.msra.mxu0 0.0
    %151 = vmatpush.msra.mxu0 0.0
    %152 = vmatpush.msra.mxu0 0.0
    %153 = vmatpush.msra.mxu0 0.0
    %154 = vmatpush.msra.mxu0 0.0
    %155 = vmatpush.msra.mxu0 %v122
    %156 = vmatpush.msra.mxu0 %v119
    %157 = vmatpush.msra.mxu0 %v116
    %158 = vmatpush.msra.mxu0 %v113
    %159 = vmatpush.msra.mxu0 %v110
    %160 = vmatpush.msra.mxu0 %v107
    %161 = vmatpush.msra.mxu0 %v104
    %162 = vmatpush.msra.mxu0 %v101
    %163 = vmatmul.f32.gmra.mxu0 %v145
    %v164 = vpop.f32.mrf.mxu0
    %v165 = vadd.f32 %v128, %v164
    %166 = vdwg.mxu0
    %v168 = vrot.slane %v165, 1
    %v171 = vadd.f32 %v96, %v165
    %v172 = vadd.f32 %v99, %v168
    %v173 = vxor.u32 %v171, 2147483648
    %v174 = vxor.u32 %v172, 2147483648
    %v175 = vmul.f32 %v173, 1.442695
    %v176 = vpow.pop %v175
    %v177 = vmul.f32 %v174, 1.442695
    %v178 = vpow.pop %v177
    %v179 = vadd.f32 %v176, 1.0
    %v180 = vadd.f32 %v178, 1.0
    %v181 = vrcp.pop %v179
    %v182 = vmul.f32 %v179, %v181
    %v183 = vsub.f32 1.0, %v182
    %v184 = vmul.f32 %v181, %v183
    %v185 = vadd.f32 %v181, %v184
    %vm186 = vweird.f32 %v179
    %vm187 = vweird.f32 %v181
    %vm188 = vmor %vm186, %vm187
    %v189 = vsel %vm188, %v181, %v185
    %v190 = vand.u32 2147483647, %v179
    %vm191 = vcmp.eq.f32.partialorder %v190, 8.507059e+37
    %v192 = vand.u32 %v179, 2147483648
    %v193 = vor.u32 1.1754944e-38, %v192
    %v194 = vsel %vm191, %v193, %v189
    %v195 = vmul.f32 1.0, %v194
    %v196 = vrcp.pop %v180
    %v197 = vmul.f32 %v180, %v196
    %v198 = vsub.f32 1.0, %v197
    %v199 = vmul.f32 %v196, %v198
    %v200 = vadd.f32 %v196, %v199
    %vm201 = vweird.f32 %v180
    %vm202 = vweird.f32 %v196
    %vm203 = vmor %vm201, %vm202
    %v204 = vsel %vm203, %v196, %v200
    %v205 = vand.u32 2147483647, %v180
    %vm206 = vcmp.eq.f32.partialorder %v205, 8.507059e+37
    %v207 = vand.u32 %v180, 2147483648
    %v208 = vor.u32 1.1754944e-38, %v207
    %v209 = vsel %vm206, %v208, %v204
    %v210 = vmul.f32 1.0, %v209
    %211 = vrot.lane.b32.xlu0 %v165, 64
    %v212 = vpop.permute.xlu0 %211
    %213 = vrot.lane.b32.xlu0 %v168, 64
    %v214 = vpop.permute.xlu0 %213
    %v217 = vmul.f32 %v195, %v212
    %v218 = vmul.f32 %v210, %v214
    %221 = vrot.lane.b32.xlu0 %v217, 64
    %v222 = vpop.permute.xlu0 %221
    %223 = vrot.lane.b32.xlu0 %v218, 64
    %v224 = vpop.permute.xlu0 %223
    %v227 = vadd.f32 %v96, %v222
    %v228 = vadd.f32 %v99, %v224
    %v229 = vtanh.pop %v227
    %v230 = vtanh.pop %v228
    %v231 = vsub.f32 1.0, %v195
    %v232 = vsub.f32 1.0, %v210
    %235 = vrot.lane.b32.xlu0 %v229, 96
    %v236 = vpop.permute.xlu0 %235
    %237 = vrot.lane.b32.xlu0 %v230, 96
    %v238 = vpop.permute.xlu0 %237
    %v241 = vmul.f32 %v231, %v236
    %v242 = vmul.f32 %v232, %v238
    %v244 = vrot.slane %v134, 1
    %245 = vrot.lane.b32.xlu0 %v134, 32
    %v246 = vpop.permute.xlu0 %245
    %247 = vrot.lane.b32.xlu0 %v244, 32
    %v248 = vpop.permute.xlu0 %247
    %v251 = vmul.f32 %v195, %v246
    %v252 = vmul.f32 %v210, %v248
    %v253 = vadd.f32 %v241, %v251
    %v254 = vadd.f32 %v242, %v252
    %v257 = vrot.slane %v254, 7
    %vm258 = vcmask 1041409
    %v259 = vsel %vm258, %v257, %v253
    %260 = vrot.lane.b32.xlu0 %v259, 96
    %v261 = vpop.permute.xlu0 %260
    %v263 = vsel %vm141, %v261, %v139
    %v265 = vsel %vm143, %v263, 0
    %267 = vmatpush.msra.mxu0 0.0
    %268 = vmatpush.msra.mxu0 0.0
    %269 = vmatpush.msra.mxu0 0.0
    %270 = vmatpush.msra.mxu0 0.0
    %271 = vmatpush.msra.mxu0 0.0
    %272 = vmatpush.msra.mxu0 0.0
    %273 = vmatpush.msra.mxu0 0.0
    %274 = vmatpush.msra.mxu0 0.0
    %275 = vmatpush.msra.mxu0 %v122
    %276 = vmatpush.msra.mxu0 %v119
    %277 = vmatpush.msra.mxu0 %v116
    %278 = vmatpush.msra.mxu0 %v113
    %279 = vmatpush.msra.mxu0 %v110
    %280 = vmatpush.msra.mxu0 %v107
    %281 = vmatpush.msra.mxu0 %v104
    %282 = vmatpush.msra.mxu0 %v101
    %283 = vmatmul.f32.gmra.mxu0 %v265
    %v284 = vpop.f32.mrf.mxu0
    %v285 = vadd.f32 %v128, %v284
    %286 = vdwg.mxu0
    %287 = vmatpush.msra.mxu0 0.0
    %288 = vmatpush.msra.mxu0 0.0
    %289 = vmatpush.msra.mxu0 0.0
    %290 = vmatpush.msra.mxu0 0.0
    %291 = vmatpush.msra.mxu0 0.0
    %292 = vmatpush.msra.mxu0 0.0
    %293 = vmatpush.msra.mxu0 0.0
    %294 = vmatpush.msra.mxu0 0.0
    %295 = vmatpush.msra.mxu0 %v123
    %296 = vmatpush.msra.mxu0 %v120
    %297 = vmatpush.msra.mxu0 %v117
    %298 = vmatpush.msra.mxu0 %v114
    %299 = vmatpush.msra.mxu0 %v111
    %300 = vmatpush.msra.mxu0 %v108
    %301 = vmatpush.msra.mxu0 %v105
    %302 = vmatpush.msra.mxu0 %v102
    %303 = vmatmul.f32.gmra.mxu0 %v265
    %v304 = vpop.f32.mrf.mxu0
    %v305 = vadd.f32 %v129, %v304
    %306 = vdwg.mxu0
    %307 = vmatpush.msra.mxu0 0.0
    %308 = vmatpush.msra.mxu0 0.0
    %309 = vmatpush.msra.mxu0 0.0
    %310 = vmatpush.msra.mxu0 0.0
    %311 = vmatpush.msra.mxu0 0.0
    %312 = vmatpush.msra.mxu0 0.0
    %313 = vmatpush.msra.mxu0 0.0
    %314 = vmatpush.msra.mxu0 0.0
    %315 = vmatpush.msra.mxu0 %v124
    %316 = vmatpush.msra.mxu0 %v121
    %317 = vmatpush.msra.mxu0 %v118
    %318 = vmatpush.msra.mxu0 %v115
    %319 = vmatpush.msra.mxu0 %v112
    %320 = vmatpush.msra.mxu0 %v109
    %321 = vmatpush.msra.mxu0 %v106
    %322 = vmatpush.msra.mxu0 %v103
    %323 = vmatmul.f32.gmra.mxu0 %v265
    %v324 = vpop.f32.mrf.mxu0
    %v325 = vadd.f32 %v130, %v324
    %326 = vdwg.mxu0
    %v328 = vrot.slane %v285, 7
    %v331 = vadd.f32 %v96, %v328
    %v332 = vadd.f32 %v99, %v285
    %v333 = vxor.u32 %v331, 2147483648
    %v334 = vxor.u32 %v332, 2147483648
    %v335 = vmul.f32 %v333, 1.442695
    %v336 = vpow.pop %v335
    %v337 = vmul.f32 %v334, 1.442695
    %v338 = vpow.pop %v337
    %v339 = vadd.f32 %v336, 1.0
    %v340 = vadd.f32 %v338, 1.0
    %v341 = vrcp.pop %v339
    %v342 = vmul.f32 %v339, %v341
    %v343 = vsub.f32 1.0, %v342
    %v344 = vmul.f32 %v341, %v343
    %v345 = vadd.f32 %v341, %v344
    %vm346 = vweird.f32 %v339
    %vm347 = vweird.f32 %v341
    %vm348 = vmor %vm346, %vm347
    %v349 = vsel %vm348, %v341, %v345
    %v350 = vand.u32 2147483647, %v339
    %vm351 = vcmp.eq.f32.partialorder %v350, 8.507059e+37
    %v352 = vand.u32 %v339, 2147483648
    %v353 = vor.u32 1.1754944e-38, %v352
    %v354 = vsel %vm351, %v353, %v349
    %v355 = vmul.f32 1.0, %v354
    %v356 = vrcp.pop %v340
    %v357 = vmul.f32 %v340, %v356
    %v358 = vsub.f32 1.0, %v357
    %v359 = vmul.f32 %v356, %v358
    %v360 = vadd.f32 %v356, %v359
    %vm361 = vweird.f32 %v340
    %vm362 = vweird.f32 %v356
    %vm363 = vmor %vm361, %vm362
    %v364 = vsel %vm363, %v356, %v360
    %v365 = vand.u32 2147483647, %v340
    %vm366 = vcmp.eq.f32.partialorder %v365, 8.507059e+37
    %v367 = vand.u32 %v340, 2147483648
    %v368 = vor.u32 1.1754944e-38, %v367
    %v369 = vsel %vm366, %v368, %v364
    %v370 = vmul.f32 1.0, %v369
    %371 = vrot.lane.b32.xlu0 %v328, 64
    %v372 = vpop.permute.xlu0 %371
    %373 = vrot.lane.b32.xlu0 %v285, 64
    %v374 = vpop.permute.xlu0 %373
    %v377 = vmul.f32 %v355, %v372
    %v378 = vmul.f32 %v370, %v374
    %381 = vrot.lane.b32.xlu0 %v377, 64
    %v382 = vpop.permute.xlu0 %381
    %383 = vrot.lane.b32.xlu0 %v378, 64
    %v384 = vpop.permute.xlu0 %383
    %v387 = vadd.f32 %v96, %v382
    %v388 = vadd.f32 %v99, %v384
    %v389 = vtanh.pop %v387
    %v390 = vtanh.pop %v388
    %v391 = vsub.f32 1.0, %v355
    %v392 = vsub.f32 1.0, %v370
    %395 = vrot.lane.b32.xlu0 %v389, 96
    %v396 = vpop.permute.xlu0 %395
    %397 = vrot.lane.b32.xlu0 %v390, 96
    %v398 = vpop.permute.xlu0 %397
    %v401 = vmul.f32 %v391, %v396
    %v402 = vmul.f32 %v392, %v398
    %v403 = vrot.slane %v253, 7
    %v406 = vmul.f32 %v355, %v403
    %v407 = vmul.f32 %v370, %v257
    %v408 = vadd.f32 %v401, %v406
    %v409 = vadd.f32 %v402, %v407
    %v410 = vadd.f32 %v305, %v325
    %v411 = vxor.u32 %v410, 2147483648
    %v412 = vmul.f32 %v411, 1.442695
    %v413 = vpow.pop %v412
    %v414 = vadd.f32 %v413, 1.0
    %v415 = vrcp.pop %v414
    %v416 = vmul.f32 %v414, %v415
    %v417 = vsub.f32 1.0, %v416
    %v418 = vmul.f32 %v415, %v417
    %v419 = vadd.f32 %v415, %v418
    %vm420 = vweird.f32 %v414
    %vm421 = vweird.f32 %v415
    %vm422 = vmor %vm420, %vm421
    %v423 = vsel %vm422, %v415, %v419
    %v424 = vand.u32 2147483647, %v414
    %vm425 = vcmp.eq.f32.partialorder %v424, 8.507059e+37
    %v426 = vand.u32 %v414, 2147483648
    %v427 = vor.u32 1.1754944e-38, %v426
    %v428 = vsel %vm425, %v427, %v423
    %v429 = vmul.f32 1.0, %v428
    %431 = vrot.lane.b32.xlu0 %v325, 64
    %v432 = vpop.permute.xlu0 %431
    %v434 = vmul.f32 %v429, %v432
    %436 = vrot.lane.b32.xlu0 %v434, 64
    %v437 = vpop.permute.xlu0 %436
    %v439 = vadd.f32 %v305, %v437
    %v440 = vtanh.pop %v439
    %v441 = vsub.f32 1.0, %v429
    %443 = vrot.lane.b32.xlu0 %v440, 96
    %v444 = vpop.permute.xlu0 %443
    %v446 = vmul.f32 %v441, %v444
    %v447 = vmul.f32 %v429, %v139
    %v448 = vadd.f32 %v446, %v447
    %v451 = vrot.slane %v409, 7
    %vm452 = vcmask 1042434
    %v453 = vsel %vm452, %v451, %v408
    %454 = vrot.lane.b32.xlu0 %v453, 96
    %v455 = vpop.permute.xlu0 %454
    %v458 = vrot.slane %v448, 7
    %v460 = vsel %vm141, %v455, %v458
    %v462 = vrot.slane %v460, 1
    %v463 = vsel %vm143, %v462, 0
    %465 = vmatpush.msra.mxu0 0.0
    %466 = vmatpush.msra.mxu0 0.0
    %467 = vmatpush.msra.mxu0 0.0
    %468 = vmatpush.msra.mxu0 0.0
    %469 = vmatpush.msra.mxu0 0.0
    %470 = vmatpush.msra.mxu0 0.0
    %471 = vmatpush.msra.mxu0 0.0
    %472 = vmatpush.msra.mxu0 0.0
    %473 = vmatpush.msra.mxu0 %v122
    %474 = vmatpush.msra.mxu0 %v119
    %475 = vmatpush.msra.mxu0 %v116
    %476 = vmatpush.msra.mxu0 %v113
    %477 = vmatpush.msra.mxu0 %v110
    %478 = vmatpush.msra.mxu0 %v107
    %479 = vmatpush.msra.mxu0 %v104
    %480 = vmatpush.msra.mxu0 %v101
    %481 = vmatmul.f32.gmra.mxu0 %v463
    %v482 = vpop.f32.mrf.mxu0
    %v483 = vadd.f32 %v128, %v482
    %484 = vdwg.mxu0
    %485 = vmatpush.msra.mxu0 0.0
    %486 = vmatpush.msra.mxu0 0.0
    %487 = vmatpush.msra.mxu0 0.0
    %488 = vmatpush.msra.mxu0 0.0
    %489 = vmatpush.msra.mxu0 0.0
    %490 = vmatpush.msra.mxu0 0.0
    %491 = vmatpush.msra.mxu0 0.0
    %492 = vmatpush.msra.mxu0 0.0
    %493 = vmatpush.msra.mxu0 %v123
    %494 = vmatpush.msra.mxu0 %v120
    %495 = vmatpush.msra.mxu0 %v117
    %496 = vmatpush.msra.mxu0 %v114
    %497 = vmatpush.msra.mxu0 %v111
    %498 = vmatpush.msra.mxu0 %v108
    %499 = vmatpush.msra.mxu0 %v105
    %500 = vmatpush.msra.mxu0 %v102
    %501 = vmatmul.f32.gmra.mxu0 %v463
    %v502 = vpop.f32.mrf.mxu0
    %v503 = vadd.f32 %v129, %v502
    %504 = vdwg.mxu0
    %505 = vmatpush.msra.mxu0 0.0
    %506 = vmatpush.msra.mxu0 0.0
    %507 = vmatpush.msra.mxu0 0.0
    %508 = vmatpush.msra.mxu0 0.0
    %509 = vmatpush.msra.mxu0 0.0
    %510 = vmatpush.msra.mxu0 0.0
    %511 = vmatpush.msra.mxu0 0.0
    %512 = vmatpush.msra.mxu0 0.0
    %513 = vmatpush.msra.mxu0 %v124
    %514 = vmatpush.msra.mxu0 %v121
    %515 = vmatpush.msra.mxu0 %v118
    %516 = vmatpush.msra.mxu0 %v115
    %517 = vmatpush.msra.mxu0 %v112
    %518 = vmatpush.msra.mxu0 %v109
    %519 = vmatpush.msra.mxu0 %v106
    %520 = vmatpush.msra.mxu0 %v103
    %521 = vmatmul.f32.gmra.mxu0 %v463
    %v522 = vpop.f32.mrf.mxu0
    %v523 = vadd.f32 %v130, %v522
    %524 = vdwg.mxu0
    %v526 = vrot.slane %v483, 6
    %v527 = vrot.slane %v483, 7
    %v530 = vadd.f32 %v96, %v526
    %v531 = vadd.f32 %v99, %v527
    %v532 = vxor.u32 %v530, 2147483648
    %v533 = vxor.u32 %v531, 2147483648
    %v534 = vmul.f32 %v532, 1.442695
    %v535 = vpow.pop %v534
    %v536 = vmul.f32 %v533, 1.442695
    %v537 = vpow.pop %v536
    %v538 = vadd.f32 %v535, 1.0
    %v539 = vadd.f32 %v537, 1.0
    %v540 = vrcp.pop %v538
    %v541 = vmul.f32 %v538, %v540
    %v542 = vsub.f32 1.0, %v541
    %v543 = vmul.f32 %v540, %v542
    %v544 = vadd.f32 %v540, %v543
    %vm545 = vweird.f32 %v538
    %vm546 = vweird.f32 %v540
    %vm547 = vmor %vm545, %vm546
    %v548 = vsel %vm547, %v540, %v544
    %v549 = vand.u32 2147483647, %v538
    %vm550 = vcmp.eq.f32.partialorder %v549, 8.507059e+37
    %v551 = vand.u32 %v538, 2147483648
    %v552 = vor.u32 1.1754944e-38, %v551
    %v553 = vsel %vm550, %v552, %v548
    %v554 = vmul.f32 1.0, %v553
    %v555 = vrcp.pop %v539
    %v556 = vmul.f32 %v539, %v555
    %v557 = vsub.f32 1.0, %v556
    %v558 = vmul.f32 %v555, %v557
    %v559 = vadd.f32 %v555, %v558
    %vm560 = vweird.f32 %v539
    %vm561 = vweird.f32 %v555
    %vm562 = vmor %vm560, %vm561
    %v563 = vsel %vm562, %v555, %v559
    %v564 = vand.u32 2147483647, %v539
    %vm565 = vcmp.eq.f32.partialorder %v564, 8.507059e+37
    %v566 = vand.u32 %v539, 2147483648
    %v567 = vor.u32 1.1754944e-38, %v566
    %v568 = vsel %vm565, %v567, %v563
    %v569 = vmul.f32 1.0, %v568
    %570 = vrot.lane.b32.xlu0 %v526, 64
    %v571 = vpop.permute.xlu0 %570
    %572 = vrot.lane.b32.xlu0 %v527, 64
    %v573 = vpop.permute.xlu0 %572
    %v576 = vmul.f32 %v554, %v571
    %v577 = vmul.f32 %v569, %v573
    %580 = vrot.lane.b32.xlu0 %v576, 64
    %v581 = vpop.permute.xlu0 %580
    %582 = vrot.lane.b32.xlu0 %v577, 64
    %v583 = vpop.permute.xlu0 %582
    %v586 = vadd.f32 %v96, %v581
    %v587 = vadd.f32 %v99, %v583
    %v588 = vtanh.pop %v586
    %v589 = vtanh.pop %v587
    %v590 = vsub.f32 1.0, %v554
    %v591 = vsub.f32 1.0, %v569
    %594 = vrot.lane.b32.xlu0 %v588, 96
    %v595 = vpop.permute.xlu0 %594
    %596 = vrot.lane.b32.xlu0 %v589, 96
    %v597 = vpop.permute.xlu0 %596
    %v600 = vmul.f32 %v590, %v595
    %v601 = vmul.f32 %v591, %v597
    %v602 = vrot.slane %v408, 7
    %v605 = vmul.f32 %v554, %v602
    %v606 = vmul.f32 %v569, %v451
    %v607 = vadd.f32 %v600, %v605
    %v608 = vadd.f32 %v601, %v606
    %v609 = vadd.f32 %v503, %v523
    %v610 = vxor.u32 %v609, 2147483648
    %v611 = vmul.f32 %v610, 1.442695
    %v612 = vpow.pop %v611
    %v613 = vadd.f32 %v612, 1.0
    %v614 = vrcp.pop %v613
    %v615 = vmul.f32 %v613, %v614
    %v616 = vsub.f32 1.0, %v615
    %v617 = vmul.f32 %v614, %v616
    %v618 = vadd.f32 %v614, %v617
    %vm619 = vweird.f32 %v613
    %vm620 = vweird.f32 %v614
    %vm621 = vmor %vm619, %vm620
    %v622 = vsel %vm621, %v614, %v618
    %v623 = vand.u32 2147483647, %v613
    %vm624 = vcmp.eq.f32.partialorder %v623, 8.507059e+37
    %v625 = vand.u32 %v613, 2147483648
    %v626 = vor.u32 1.1754944e-38, %v625
    %v627 = vsel %vm624, %v626, %v622
    %v628 = vmul.f32 1.0, %v627
    %630 = vrot.lane.b32.xlu0 %v523, 64
    %v631 = vpop.permute.xlu0 %630
    %v633 = vmul.f32 %v628, %v631
    %635 = vrot.lane.b32.xlu0 %v633, 64
    %v636 = vpop.permute.xlu0 %635
    %v638 = vadd.f32 %v503, %v636
    %v639 = vtanh.pop %v638
    %v640 = vsub.f32 1.0, %v628
    %642 = vrot.lane.b32.xlu0 %v639, 96
    %v643 = vpop.permute.xlu0 %642
    %v645 = vmul.f32 %v640, %v643
    %v646 = vmul.f32 %v628, %v448
    %v647 = vadd.f32 %v645, %v646
    %v650 = vrot.slane %v608, 7
    %vm651 = vcmask 1043459
    %v652 = vsel %vm651, %v650, %v607
    %653 = vrot.lane.b32.xlu0 %v652, 96
    %v654 = vpop.permute.xlu0 %653
    %v657 = vrot.slane %v647, 6
    %v659 = vsel %vm141, %v654, %v657
    %v661 = vrot.slane %v659, 2
    %v662 = vsel %vm143, %v661, 0
    %664 = vmatpush.msra.mxu0 0.0
    %665 = vmatpush.msra.mxu0 0.0
    %666 = vmatpush.msra.mxu0 0.0
    %667 = vmatpush.msra.mxu0 0.0
    %668 = vmatpush.msra.mxu0 0.0
    %669 = vmatpush.msra.mxu0 0.0
    %670 = vmatpush.msra.mxu0 0.0
    %671 = vmatpush.msra.mxu0 0.0
    %672 = vmatpush.msra.mxu0 %v122
    %673 = vmatpush.msra.mxu0 %v119
    %674 = vmatpush.msra.mxu0 %v116
    %675 = vmatpush.msra.mxu0 %v113
    %676 = vmatpush.msra.mxu0 %v110
    %677 = vmatpush.msra.mxu0 %v107
    %678 = vmatpush.msra.mxu0 %v104
    %679 = vmatpush.msra.mxu0 %v101
    %680 = vmatmul.f32.gmra.mxu0 %v662
    %v681 = vpop.f32.mrf.mxu0
    %v682 = vadd.f32 %v128, %v681
    %683 = vdwg.mxu0
    %684 = vmatpush.msra.mxu0 0.0
    %685 = vmatpush.msra.mxu0 0.0
    %686 = vmatpush.msra.mxu0 0.0
    %687 = vmatpush.msra.mxu0 0.0
    %688 = vmatpush.msra.mxu0 0.0
    %689 = vmatpush.msra.mxu0 0.0
    %690 = vmatpush.msra.mxu0 0.0
    %691 = vmatpush.msra.mxu0 0.0
    %692 = vmatpush.msra.mxu0 %v123
    %693 = vmatpush.msra.mxu0 %v120
    %694 = vmatpush.msra.mxu0 %v117
    %695 = vmatpush.msra.mxu0 %v114
    %696 = vmatpush.msra.mxu0 %v111
    %697 = vmatpush.msra.mxu0 %v108
    %698 = vmatpush.msra.mxu0 %v105
    %699 = vmatpush.msra.mxu0 %v102
    %700 = vmatmul.f32.gmra.mxu0 %v662
    %v701 = vpop.f32.mrf.mxu0
    %v702 = vadd.f32 %v129, %v701
    %703 = vdwg.mxu0
    %704 = vmatpush.msra.mxu0 0.0
    %705 = vmatpush.msra.mxu0 0.0
    %706 = vmatpush.msra.mxu0 0.0
    %707 = vmatpush.msra.mxu0 0.0
    %708 = vmatpush.msra.mxu0 0.0
    %709 = vmatpush.msra.mxu0 0.0
    %710 = vmatpush.msra.mxu0 0.0
    %711 = vmatpush.msra.mxu0 0.0
    %712 = vmatpush.msra.mxu0 %v124
    %713 = vmatpush.msra.mxu0 %v121
    %714 = vmatpush.msra.mxu0 %v118
    %715 = vmatpush.msra.mxu0 %v115
    %716 = vmatpush.msra.mxu0 %v112
    %717 = vmatpush.msra.mxu0 %v109
    %718 = vmatpush.msra.mxu0 %v106
    %719 = vmatpush.msra.mxu0 %v103
    %720 = vmatmul.f32.gmra.mxu0 %v662
    %v721 = vpop.f32.mrf.mxu0
    %v722 = vadd.f32 %v130, %v721
    %723 = vdwg.mxu0
    %v725 = vrot.slane %v682, 5
    %v726 = vrot.slane %v682, 6
    %v729 = vadd.f32 %v96, %v725
    %v730 = vadd.f32 %v99, %v726
    %v731 = vxor.u32 %v729, 2147483648
    %v732 = vxor.u32 %v730, 2147483648
    %v733 = vmul.f32 %v731, 1.442695
    %v734 = vpow.pop %v733
    %v735 = vmul.f32 %v732, 1.442695
    %v736 = vpow.pop %v735
    %v737 = vadd.f32 %v734, 1.0
    %v738 = vadd.f32 %v736, 1.0
    %v739 = vrcp.pop %v737
    %v740 = vmul.f32 %v737, %v739
    %v741 = vsub.f32 1.0, %v740
    %v742 = vmul.f32 %v739, %v741
    %v743 = vadd.f32 %v739, %v742
    %vm744 = vweird.f32 %v737
    %vm745 = vweird.f32 %v739
    %vm746 = vmor %vm744, %vm745
    %v747 = vsel %vm746, %v739, %v743
    %v748 = vand.u32 2147483647, %v737
    %vm749 = vcmp.eq.f32.partialorder %v748, 8.507059e+37
    %v750 = vand.u32 %v737, 2147483648
    %v751 = vor.u32 1.1754944e-38, %v750
    %v752 = vsel %vm749, %v751, %v747
    %v753 = vmul.f32 1.0, %v752
    %v754 = vrcp.pop %v738
    %v755 = vmul.f32 %v738, %v754
    %v756 = vsub.f32 1.0, %v755
    %v757 = vmul.f32 %v754, %v756
    %v758 = vadd.f32 %v754, %v757
    %vm759 = vweird.f32 %v738
    %vm760 = vweird.f32 %v754
    %vm761 = vmor %vm759, %vm760
    %v762 = vsel %vm761, %v754, %v758
    %v763 = vand.u32 2147483647, %v738
    %vm764 = vcmp.eq.f32.partialorder %v763, 8.507059e+37
    %v765 = vand.u32 %v738, 2147483648
    %v766 = vor.u32 1.1754944e-38, %v765
    %v767 = vsel %vm764, %v766, %v762
    %v768 = vmul.f32 1.0, %v767
    %769 = vrot.lane.b32.xlu0 %v725, 64
    %v770 = vpop.permute.xlu0 %769
    %771 = vrot.lane.b32.xlu0 %v726, 64
    %v772 = vpop.permute.xlu0 %771
    %v775 = vmul.f32 %v753, %v770
    %v776 = vmul.f32 %v768, %v772
    %779 = vrot.lane.b32.xlu0 %v775, 64
    %v780 = vpop.permute.xlu0 %779
    %781 = vrot.lane.b32.xlu0 %v776, 64
    %v782 = vpop.permute.xlu0 %781
    %v785 = vadd.f32 %v96, %v780
    %v786 = vadd.f32 %v99, %v782
    %v787 = vtanh.pop %v785
    %v788 = vtanh.pop %v786
    %v789 = vsub.f32 1.0, %v753
    %v790 = vsub.f32 1.0, %v768
    %793 = vrot.lane.b32.xlu0 %v787, 96
    %v794 = vpop.permute.xlu0 %793
    %795 = vrot.lane.b32.xlu0 %v788, 96
    %v796 = vpop.permute.xlu0 %795
    %v799 = vmul.f32 %v789, %v794
    %v800 = vmul.f32 %v790, %v796
    %v801 = vrot.slane %v607, 7
    %v804 = vmul.f32 %v753, %v801
    %v805 = vmul.f32 %v768, %v650
    %v806 = vadd.f32 %v799, %v804
    %v807 = vadd.f32 %v800, %v805
    %v808 = vadd.f32 %v702, %v722
    %v809 = vxor.u32 %v808, 2147483648
    %v810 = vmul.f32 %v809, 1.442695
    %v811 = vpow.pop %v810
    %v812 = vadd.f32 %v811, 1.0
    %v813 = vrcp.pop %v812
    %v814 = vmul.f32 %v812, %v813
    %v815 = vsub.f32 1.0, %v814
    %v816 = vmul.f32 %v813, %v815
    %v817 = vadd.f32 %v813, %v816
    %vm818 = vweird.f32 %v812
    %vm819 = vweird.f32 %v813
    %vm820 = vmor %vm818, %vm819
    %v821 = vsel %vm820, %v813, %v817
    %v822 = vand.u32 2147483647, %v812
    %vm823 = vcmp.eq.f32.partialorder %v822, 8.507059e+37
    %v824 = vand.u32 %v812, 2147483648
    %v825 = vor.u32 1.1754944e-38, %v824
    %v826 = vsel %vm823, %v825, %v821
    %v827 = vmul.f32 1.0, %v826
    %829 = vrot.lane.b32.xlu0 %v722, 64
    %v830 = vpop.permute.xlu0 %829
    %v832 = vmul.f32 %v827, %v830
    %834 = vrot.lane.b32.xlu0 %v832, 64
    %v835 = vpop.permute.xlu0 %834
    %v837 = vadd.f32 %v702, %v835
    %v838 = vtanh.pop %v837
    %v839 = vsub.f32 1.0, %v827
    %841 = vrot.lane.b32.xlu0 %v838, 96
    %v842 = vpop.permute.xlu0 %841
    %v844 = vmul.f32 %v839, %v842
    %v845 = vmul.f32 %v827, %v647
    %v846 = vadd.f32 %v844, %v845
    %v849 = vrot.slane %v807, 7
    %vm850 = vcmask 1044484
    %v851 = vsel %vm850, %v849, %v806
    %852 = vrot.lane.b32.xlu0 %v851, 96
    %v853 = vpop.permute.xlu0 %852
    %v856 = vrot.slane %v846, 5
    %v858 = vsel %vm141, %v853, %v856
    %v860 = vrot.slane %v858, 3
    %v861 = vsel %vm143, %v860, 0
    %863 = vmatpush.msra.mxu0 0.0
    %864 = vmatpush.msra.mxu0 0.0
    %865 = vmatpush.msra.mxu0 0.0
    %866 = vmatpush.msra.mxu0 0.0
    %867 = vmatpush.msra.mxu0 0.0
    %868 = vmatpush.msra.mxu0 0.0
    %869 = vmatpush.msra.mxu0 0.0
    %870 = vmatpush.msra.mxu0 0.0
    %871 = vmatpush.msra.mxu0 %v122
    %872 = vmatpush.msra.mxu0 %v119
    %873 = vmatpush.msra.mxu0 %v116
    %874 = vmatpush.msra.mxu0 %v113
    %875 = vmatpush.msra.mxu0 %v110
    %876 = vmatpush.msra.mxu0 %v107
    %877 = vmatpush.msra.mxu0 %v104
    %878 = vmatpush.msra.mxu0 %v101
    %879 = vmatmul.f32.gmra.mxu0 %v861
    %v880 = vpop.f32.mrf.mxu0
    %v881 = vadd.f32 %v128, %v880
    %882 = vdwg.mxu0
    %883 = vmatpush.msra.mxu0 0.0
    %884 = vmatpush.msra.mxu0 0.0
    %885 = vmatpush.msra.mxu0 0.0
    %886 = vmatpush.msra.mxu0 0.0
    %887 = vmatpush.msra.mxu0 0.0
    %888 = vmatpush.msra.mxu0 0.0
    %889 = vmatpush.msra.mxu0 0.0
    %890 = vmatpush.msra.mxu0 0.0
    %891 = vmatpush.msra.mxu0 %v123
    %892 = vmatpush.msra.mxu0 %v120
    %893 = vmatpush.msra.mxu0 %v117
    %894 = vmatpush.msra.mxu0 %v114
    %895 = vmatpush.msra.mxu0 %v111
    %896 = vmatpush.msra.mxu0 %v108
    %897 = vmatpush.msra.mxu0 %v105
    %898 = vmatpush.msra.mxu0 %v102
    %899 = vmatmul.f32.gmra.mxu0 %v861
    %v900 = vpop.f32.mrf.mxu0
    %v901 = vadd.f32 %v129, %v900
    %902 = vdwg.mxu0
    %903 = vmatpush.msra.mxu0 0.0
    %904 = vmatpush.msra.mxu0 0.0
    %905 = vmatpush.msra.mxu0 0.0
    %906 = vmatpush.msra.mxu0 0.0
    %907 = vmatpush.msra.mxu0 0.0
    %908 = vmatpush.msra.mxu0 0.0
    %909 = vmatpush.msra.mxu0 0.0
    %910 = vmatpush.msra.mxu0 0.0
    %911 = vmatpush.msra.mxu0 %v124
    %912 = vmatpush.msra.mxu0 %v121
    %913 = vmatpush.msra.mxu0 %v118
    %914 = vmatpush.msra.mxu0 %v115
    %915 = vmatpush.msra.mxu0 %v112
    %916 = vmatpush.msra.mxu0 %v109
    %917 = vmatpush.msra.mxu0 %v106
    %918 = vmatpush.msra.mxu0 %v103
    %919 = vmatmul.f32.gmra.mxu0 %v861
    %v920 = vpop.f32.mrf.mxu0
    %v921 = vadd.f32 %v130, %v920
    %922 = vdwg.mxu0
    %v924 = vrot.slane %v881, 4
    %v925 = vrot.slane %v881, 5
    %v928 = vadd.f32 %v96, %v924
    %v929 = vadd.f32 %v99, %v925
    %v930 = vxor.u32 %v928, 2147483648
    %v931 = vxor.u32 %v929, 2147483648
    %v932 = vmul.f32 %v930, 1.442695
    %v933 = vpow.pop %v932
    %v934 = vmul.f32 %v931, 1.442695
    %v935 = vpow.pop %v934
    %v936 = vadd.f32 %v933, 1.0
    %v937 = vadd.f32 %v935, 1.0
    %v938 = vrcp.pop %v936
    %v939 = vmul.f32 %v936, %v938
    %v940 = vsub.f32 1.0, %v939
    %v941 = vmul.f32 %v938, %v940
    %v942 = vadd.f32 %v938, %v941
    %vm943 = vweird.f32 %v936
    %vm944 = vweird.f32 %v938
    %vm945 = vmor %vm943, %vm944
    %v946 = vsel %vm945, %v938, %v942
    %v947 = vand.u32 2147483647, %v936
    %vm948 = vcmp.eq.f32.partialorder %v947, 8.507059e+37
    %v949 = vand.u32 %v936, 2147483648
    %v950 = vor.u32 1.1754944e-38, %v949
    %v951 = vsel %vm948, %v950, %v946
    %v952 = vmul.f32 1.0, %v951
    %v953 = vrcp.pop %v937
    %v954 = vmul.f32 %v937, %v953
    %v955 = vsub.f32 1.0, %v954
    %v956 = vmul.f32 %v953, %v955
    %v957 = vadd.f32 %v953, %v956
    %vm958 = vweird.f32 %v937
    %vm959 = vweird.f32 %v953
    %vm960 = vmor %vm958, %vm959
    %v961 = vsel %vm960, %v953, %v957
    %v962 = vand.u32 2147483647, %v937
    %vm963 = vcmp.eq.f32.partialorder %v962, 8.507059e+37
    %v964 = vand.u32 %v937, 2147483648
    %v965 = vor.u32 1.1754944e-38, %v964
    %v966 = vsel %vm963, %v965, %v961
    %v967 = vmul.f32 1.0, %v966
    %968 = vrot.lane.b32.xlu0 %v924, 64
    %v969 = vpop.permute.xlu0 %968
    %970 = vrot.lane.b32.xlu0 %v925, 64
    %v971 = vpop.permute.xlu0 %970
    %v974 = vmul.f32 %v952, %v969
    %v975 = vmul.f32 %v967, %v971
    %978 = vrot.lane.b32.xlu0 %v974, 64
    %v979 = vpop.permute.xlu0 %978
    %980 = vrot.lane.b32.xlu0 %v975, 64
    %v981 = vpop.permute.xlu0 %980
    %v984 = vadd.f32 %v96, %v979
    %v985 = vadd.f32 %v99, %v981
    %v986 = vtanh.pop %v984
    %v987 = vtanh.pop %v985
    %v988 = vsub.f32 1.0, %v952
    %v989 = vsub.f32 1.0, %v967
    %992 = vrot.lane.b32.xlu0 %v986, 96
    %v993 = vpop.permute.xlu0 %992
    %994 = vrot.lane.b32.xlu0 %v987, 96
    %v995 = vpop.permute.xlu0 %994
    %v998 = vmul.f32 %v988, %v993
    %v999 = vmul.f32 %v989, %v995
    %v1000 = vrot.slane %v806, 7
    %v1003 = vmul.f32 %v952, %v1000
    %v1004 = vmul.f32 %v967, %v849
    %v1005 = vadd.f32 %v998, %v1003
    %v1006 = vadd.f32 %v999, %v1004
    %v1007 = vadd.f32 %v901, %v921
    %v1008 = vxor.u32 %v1007, 2147483648
    %v1009 = vmul.f32 %v1008, 1.442695
    %v1010 = vpow.pop %v1009
    %v1011 = vadd.f32 %v1010, 1.0
    %v1012 = vrcp.pop %v1011
    %v1013 = vmul.f32 %v1011, %v1012
    %v1014 = vsub.f32 1.0, %v1013
    %v1015 = vmul.f32 %v1012, %v1014
    %v1016 = vadd.f32 %v1012, %v1015
    %vm1017 = vweird.f32 %v1011
    %vm1018 = vweird.f32 %v1012
    %vm1019 = vmor %vm1017, %vm1018
    %v1020 = vsel %vm1019, %v1012, %v1016
    %v1021 = vand.u32 2147483647, %v1011
    %vm1022 = vcmp.eq.f32.partialorder %v1021, 8.507059e+37
    %v1023 = vand.u32 %v1011, 2147483648
    %v1024 = vor.u32 1.1754944e-38, %v1023
    %v1025 = vsel %vm1022, %v1024, %v1020
    %v1026 = vmul.f32 1.0, %v1025
    %1028 = vrot.lane.b32.xlu0 %v921, 64
    %v1029 = vpop.permute.xlu0 %1028
    %v1031 = vmul.f32 %v1026, %v1029
    %1033 = vrot.lane.b32.xlu0 %v1031, 64
    %v1034 = vpop.permute.xlu0 %1033
    %v1036 = vadd.f32 %v901, %v1034
    %v1037 = vtanh.pop %v1036
    %v1038 = vsub.f32 1.0, %v1026
    %1040 = vrot.lane.b32.xlu0 %v1037, 96
    %v1041 = vpop.permute.xlu0 %1040
    %v1043 = vmul.f32 %v1038, %v1041
    %v1044 = vmul.f32 %v1026, %v846
    %v1045 = vadd.f32 %v1043, %v1044
    %v1048 = vrot.slane %v1006, 7
    %vm1049 = vcmask 1045509
    %v1050 = vsel %vm1049, %v1048, %v1005
    %1051 = vrot.lane.b32.xlu0 %v1050, 96
    %v1052 = vpop.permute.xlu0 %1051
    %v1055 = vrot.slane %v1045, 4
    %v1057 = vsel %vm141, %v1052, %v1055
    %v1059 = vrot.slane %v1057, 4
    %v1060 = vsel %vm143, %v1059, 0
    %1062 = vmatpush.msra.mxu0 0.0
    %1063 = vmatpush.msra.mxu0 0.0
    %1064 = vmatpush.msra.mxu0 0.0
    %1065 = vmatpush.msra.mxu0 0.0
    %1066 = vmatpush.msra.mxu0 0.0
    %1067 = vmatpush.msra.mxu0 0.0
    %1068 = vmatpush.msra.mxu0 0.0
    %1069 = vmatpush.msra.mxu0 0.0
    %1070 = vmatpush.msra.mxu0 %v122
    %1071 = vmatpush.msra.mxu0 %v119
    %1072 = vmatpush.msra.mxu0 %v116
    %1073 = vmatpush.msra.mxu0 %v113
    %1074 = vmatpush.msra.mxu0 %v110
    %1075 = vmatpush.msra.mxu0 %v107
    %1076 = vmatpush.msra.mxu0 %v104
    %1077 = vmatpush.msra.mxu0 %v101
    %1078 = vmatmul.f32.gmra.mxu0 %v1060
    %v1079 = vpop.f32.mrf.mxu0
    %v1080 = vadd.f32 %v128, %v1079
    %1081 = vdwg.mxu0
    %1082 = vmatpush.msra.mxu0 0.0
    %1083 = vmatpush.msra.mxu0 0.0
    %1084 = vmatpush.msra.mxu0 0.0
    %1085 = vmatpush.msra.mxu0 0.0
    %1086 = vmatpush.msra.mxu0 0.0
    %1087 = vmatpush.msra.mxu0 0.0
    %1088 = vmatpush.msra.mxu0 0.0
    %1089 = vmatpush.msra.mxu0 0.0
    %1090 = vmatpush.msra.mxu0 %v123
    %1091 = vmatpush.msra.mxu0 %v120
    %1092 = vmatpush.msra.mxu0 %v117
    %1093 = vmatpush.msra.mxu0 %v114
    %1094 = vmatpush.msra.mxu0 %v111
    %1095 = vmatpush.msra.mxu0 %v108
    %1096 = vmatpush.msra.mxu0 %v105
    %1097 = vmatpush.msra.mxu0 %v102
    %1098 = vmatmul.f32.gmra.mxu0 %v1060
    %v1099 = vpop.f32.mrf.mxu0
    %v1100 = vadd.f32 %v129, %v1099
    %1101 = vdwg.mxu0
    %1102 = vmatpush.msra.mxu0 0.0
    %1103 = vmatpush.msra.mxu0 0.0
    %1104 = vmatpush.msra.mxu0 0.0
    %1105 = vmatpush.msra.mxu0 0.0
    %1106 = vmatpush.msra.mxu0 0.0
    %1107 = vmatpush.msra.mxu0 0.0
    %1108 = vmatpush.msra.mxu0 0.0
    %1109 = vmatpush.msra.mxu0 0.0
    %1110 = vmatpush.msra.mxu0 %v124
    %1111 = vmatpush.msra.mxu0 %v121
    %1112 = vmatpush.msra.mxu0 %v118
    %1113 = vmatpush.msra.mxu0 %v115
    %1114 = vmatpush.msra.mxu0 %v112
    %1115 = vmatpush.msra.mxu0 %v109
    %1116 = vmatpush.msra.mxu0 %v106
    %1117 = vmatpush.msra.mxu0 %v103
    %1118 = vmatmul.f32.gmra.mxu0 %v1060
    %v1119 = vpop.f32.mrf.mxu0
    %v1120 = vadd.f32 %v130, %v1119
    %1121 = vdwg.mxu0
    %v1123 = vrot.slane %v1080, 3
    %v1124 = vrot.slane %v1080, 4
    %v1127 = vadd.f32 %v96, %v1123
    %v1128 = vadd.f32 %v99, %v1124
    %v1129 = vxor.u32 %v1127, 2147483648
    %v1130 = vxor.u32 %v1128, 2147483648
    %v1131 = vmul.f32 %v1129, 1.442695
    %v1132 = vpow.pop %v1131
    %v1133 = vmul.f32 %v1130, 1.442695
    %v1134 = vpow.pop %v1133
    %v1135 = vadd.f32 %v1132, 1.0
    %v1136 = vadd.f32 %v1134, 1.0
    %v1137 = vrcp.pop %v1135
    %v1138 = vmul.f32 %v1135, %v1137
    %v1139 = vsub.f32 1.0, %v1138
    %v1140 = vmul.f32 %v1137, %v1139
    %v1141 = vadd.f32 %v1137, %v1140
    %vm1142 = vweird.f32 %v1135
    %vm1143 = vweird.f32 %v1137
    %vm1144 = vmor %vm1142, %vm1143
    %v1145 = vsel %vm1144, %v1137, %v1141
    %v1146 = vand.u32 2147483647, %v1135
    %vm1147 = vcmp.eq.f32.partialorder %v1146, 8.507059e+37
    %v1148 = vand.u32 %v1135, 2147483648
    %v1149 = vor.u32 1.1754944e-38, %v1148
    %v1150 = vsel %vm1147, %v1149, %v1145
    %v1151 = vmul.f32 1.0, %v1150
    %v1152 = vrcp.pop %v1136
    %v1153 = vmul.f32 %v1136, %v1152
    %v1154 = vsub.f32 1.0, %v1153
    %v1155 = vmul.f32 %v1152, %v1154
    %v1156 = vadd.f32 %v1152, %v1155
    %vm1157 = vweird.f32 %v1136
    %vm1158 = vweird.f32 %v1152
    %vm1159 = vmor %vm1157, %vm1158
    %v1160 = vsel %vm1159, %v1152, %v1156
    %v1161 = vand.u32 2147483647, %v1136
    %vm1162 = vcmp.eq.f32.partialorder %v1161, 8.507059e+37
    %v1163 = vand.u32 %v1136, 2147483648
    %v1164 = vor.u32 1.1754944e-38, %v1163
    %v1165 = vsel %vm1162, %v1164, %v1160
    %v1166 = vmul.f32 1.0, %v1165
    %1167 = vrot.lane.b32.xlu0 %v1123, 64
    %v1168 = vpop.permute.xlu0 %1167
    %1169 = vrot.lane.b32.xlu0 %v1124, 64
    %v1170 = vpop.permute.xlu0 %1169
    %v1173 = vmul.f32 %v1151, %v1168
    %v1174 = vmul.f32 %v1166, %v1170
    %1177 = vrot.lane.b32.xlu0 %v1173, 64
    %v1178 = vpop.permute.xlu0 %1177
    %1179 = vrot.lane.b32.xlu0 %v1174, 64
    %v1180 = vpop.permute.xlu0 %1179
    %v1183 = vadd.f32 %v96, %v1178
    %v1184 = vadd.f32 %v99, %v1180
    %v1185 = vtanh.pop %v1183
    %v1186 = vtanh.pop %v1184
    %v1187 = vsub.f32 1.0, %v1151
    %v1188 = vsub.f32 1.0, %v1166
    %1191 = vrot.lane.b32.xlu0 %v1185, 96
    %v1192 = vpop.permute.xlu0 %1191
    %1193 = vrot.lane.b32.xlu0 %v1186, 96
    %v1194 = vpop.permute.xlu0 %1193
    %v1197 = vmul.f32 %v1187, %v1192
    %v1198 = vmul.f32 %v1188, %v1194
    %v1199 = vrot.slane %v1005, 7
    %v1202 = vmul.f32 %v1151, %v1199
    %v1203 = vmul.f32 %v1166, %v1048
    %v1204 = vadd.f32 %v1197, %v1202
    %v1205 = vadd.f32 %v1198, %v1203
    %v1206 = vadd.f32 %v1100, %v1120
    %v1207 = vxor.u32 %v1206, 2147483648
    %v1208 = vmul.f32 %v1207, 1.442695
    %v1209 = vpow.pop %v1208
    %v1210 = vadd.f32 %v1209, 1.0
    %v1211 = vrcp.pop %v1210
    %v1212 = vmul.f32 %v1210, %v1211
    %v1213 = vsub.f32 1.0, %v1212
    %v1214 = vmul.f32 %v1211, %v1213
    %v1215 = vadd.f32 %v1211, %v1214
    %vm1216 = vweird.f32 %v1210
    %vm1217 = vweird.f32 %v1211
    %vm1218 = vmor %vm1216, %vm1217
    %v1219 = vsel %vm1218, %v1211, %v1215
    %v1220 = vand.u32 2147483647, %v1210
    %vm1221 = vcmp.eq.f32.partialorder %v1220, 8.507059e+37
    %v1222 = vand.u32 %v1210, 2147483648
    %v1223 = vor.u32 1.1754944e-38, %v1222
    %v1224 = vsel %vm1221, %v1223, %v1219
    %v1225 = vmul.f32 1.0, %v1224
    %1227 = vrot.lane.b32.xlu0 %v1120, 64
    %v1228 = vpop.permute.xlu0 %1227
    %v1230 = vmul.f32 %v1225, %v1228
    %1232 = vrot.lane.b32.xlu0 %v1230, 64
    %v1233 = vpop.permute.xlu0 %1232
    %v1235 = vadd.f32 %v1100, %v1233
    %v1236 = vtanh.pop %v1235
    %v1237 = vsub.f32 1.0, %v1225
    %1239 = vrot.lane.b32.xlu0 %v1236, 96
    %v1240 = vpop.permute.xlu0 %1239
    %v1242 = vmul.f32 %v1237, %v1240
    %v1243 = vmul.f32 %v1225, %v1045
    %v1244 = vadd.f32 %v1242, %v1243
    %v1247 = vrot.slane %v1205, 7
    %vm1248 = vcmask 1046534
    %v1249 = vsel %vm1248, %v1247, %v1204
    %1250 = vrot.lane.b32.xlu0 %v1249, 96
    %v1251 = vpop.permute.xlu0 %1250
    %v1254 = vrot.slane %v1244, 3
    %v1256 = vsel %vm141, %v1251, %v1254
    %v1258 = vrot.slane %v1256, 5
    %v1259 = vsel %vm143, %v1258, 0
    %1261 = vmatpush.msra.mxu0 0.0
    %1262 = vmatpush.msra.mxu0 0.0
    %1263 = vmatpush.msra.mxu0 0.0
    %1264 = vmatpush.msra.mxu0 0.0
    %1265 = vmatpush.msra.mxu0 0.0
    %1266 = vmatpush.msra.mxu0 0.0
    %1267 = vmatpush.msra.mxu0 0.0
    %1268 = vmatpush.msra.mxu0 0.0
    %1269 = vmatpush.msra.mxu0 %v122
    %1270 = vmatpush.msra.mxu0 %v119
    %1271 = vmatpush.msra.mxu0 %v116
    %1272 = vmatpush.msra.mxu0 %v113
    %1273 = vmatpush.msra.mxu0 %v110
    %1274 = vmatpush.msra.mxu0 %v107
    %1275 = vmatpush.msra.mxu0 %v104
    %1276 = vmatpush.msra.mxu0 %v101
    %1277 = vmatmul.f32.gmra.mxu0 %v1259
    %v1278 = vpop.f32.mrf.mxu0
    %v1279 = vadd.f32 %v128, %v1278
    %1280 = vdwg.mxu0
    %1281 = vmatpush.msra.mxu0 0.0
    %1282 = vmatpush.msra.mxu0 0.0
    %1283 = vmatpush.msra.mxu0 0.0
    %1284 = vmatpush.msra.mxu0 0.0
    %1285 = vmatpush.msra.mxu0 0.0
    %1286 = vmatpush.msra.mxu0 0.0
    %1287 = vmatpush.msra.mxu0 0.0
    %1288 = vmatpush.msra.mxu0 0.0
    %1289 = vmatpush.msra.mxu0 %v123
    %1290 = vmatpush.msra.mxu0 %v120
    %1291 = vmatpush.msra.mxu0 %v117
    %1292 = vmatpush.msra.mxu0 %v114
    %1293 = vmatpush.msra.mxu0 %v111
    %1294 = vmatpush.msra.mxu0 %v108
    %1295 = vmatpush.msra.mxu0 %v105
    %1296 = vmatpush.msra.mxu0 %v102
    %1297 = vmatmul.f32.gmra.mxu0 %v1259
    %v1298 = vpop.f32.mrf.mxu0
    %v1299 = vadd.f32 %v129, %v1298
    %1300 = vdwg.mxu0
    %1301 = vmatpush.msra.mxu0 0.0
    %1302 = vmatpush.msra.mxu0 0.0
    %1303 = vmatpush.msra.mxu0 0.0
    %1304 = vmatpush.msra.mxu0 0.0
    %1305 = vmatpush.msra.mxu0 0.0
    %1306 = vmatpush.msra.mxu0 0.0
    %1307 = vmatpush.msra.mxu0 0.0
    %1308 = vmatpush.msra.mxu0 0.0
    %1309 = vmatpush.msra.mxu0 %v124
    %1310 = vmatpush.msra.mxu0 %v121
    %1311 = vmatpush.msra.mxu0 %v118
    %1312 = vmatpush.msra.mxu0 %v115
    %1313 = vmatpush.msra.mxu0 %v112
    %1314 = vmatpush.msra.mxu0 %v109
    %1315 = vmatpush.msra.mxu0 %v106
    %1316 = vmatpush.msra.mxu0 %v103
    %1317 = vmatmul.f32.gmra.mxu0 %v1259
    %v1318 = vpop.f32.mrf.mxu0
    %v1319 = vadd.f32 %v130, %v1318
    %1320 = vdwg.mxu0
    %v1322 = vrot.slane %v1279, 2
    %v1323 = vrot.slane %v1279, 3
    %v1326 = vadd.f32 %v96, %v1322
    %v1327 = vadd.f32 %v99, %v1323
    %v1328 = vxor.u32 %v1326, 2147483648
    %v1329 = vxor.u32 %v1327, 2147483648
    %v1330 = vmul.f32 %v1328, 1.442695
    %v1331 = vpow.pop %v1330
    %v1332 = vmul.f32 %v1329, 1.442695
    %v1333 = vpow.pop %v1332
    %v1334 = vadd.f32 %v1331, 1.0
    %v1335 = vadd.f32 %v1333, 1.0
    %v1336 = vrcp.pop %v1334
    %v1337 = vmul.f32 %v1334, %v1336
    %v1338 = vsub.f32 1.0, %v1337
    %v1339 = vmul.f32 %v1336, %v1338
    %v1340 = vadd.f32 %v1336, %v1339
    %vm1341 = vweird.f32 %v1334
    %vm1342 = vweird.f32 %v1336
    %vm1343 = vmor %vm1341, %vm1342
    %v1344 = vsel %vm1343, %v1336, %v1340
    %v1345 = vand.u32 2147483647, %v1334
    %vm1346 = vcmp.eq.f32.partialorder %v1345, 8.507059e+37
    %v1347 = vand.u32 %v1334, 2147483648
    %v1348 = vor.u32 1.1754944e-38, %v1347
    %v1349 = vsel %vm1346, %v1348, %v1344
    %v1350 = vmul.f32 1.0, %v1349
    %v1351 = vrcp.pop %v1335
    %v1352 = vmul.f32 %v1335, %v1351
    %v1353 = vsub.f32 1.0, %v1352
    %v1354 = vmul.f32 %v1351, %v1353
    %v1355 = vadd.f32 %v1351, %v1354
    %vm1356 = vweird.f32 %v1335
    %vm1357 = vweird.f32 %v1351
    %vm1358 = vmor %vm1356, %vm1357
    %v1359 = vsel %vm1358, %v1351, %v1355
    %v1360 = vand.u32 2147483647, %v1335
    %vm1361 = vcmp.eq.f32.partialorder %v1360, 8.507059e+37
    %v1362 = vand.u32 %v1335, 2147483648
    %v1363 = vor.u32 1.1754944e-38, %v1362
    %v1364 = vsel %vm1361, %v1363, %v1359
    %v1365 = vmul.f32 1.0, %v1364
    %1366 = vrot.lane.b32.xlu0 %v1322, 64
    %v1367 = vpop.permute.xlu0 %1366
    %1368 = vrot.lane.b32.xlu0 %v1323, 64
    %v1369 = vpop.permute.xlu0 %1368
    %v1372 = vmul.f32 %v1350, %v1367
    %v1373 = vmul.f32 %v1365, %v1369
    %1376 = vrot.lane.b32.xlu0 %v1372, 64
    %v1377 = vpop.permute.xlu0 %1376
    %1378 = vrot.lane.b32.xlu0 %v1373, 64
    %v1379 = vpop.permute.xlu0 %1378
    %v1382 = vadd.f32 %v96, %v1377
    %v1383 = vadd.f32 %v99, %v1379
    %v1384 = vtanh.pop %v1382
    %v1385 = vtanh.pop %v1383
    %v1386 = vsub.f32 1.0, %v1350
    %v1387 = vsub.f32 1.0, %v1365
    %1390 = vrot.lane.b32.xlu0 %v1384, 96
    %v1391 = vpop.permute.xlu0 %1390
    %1392 = vrot.lane.b32.xlu0 %v1385, 96
    %v1393 = vpop.permute.xlu0 %1392
    %v1396 = vmul.f32 %v1386, %v1391
    %v1397 = vmul.f32 %v1387, %v1393
    %v1398 = vrot.slane %v1204, 7
    %v1401 = vmul.f32 %v1350, %v1398
    %v1402 = vmul.f32 %v1365, %v1247
    %v1403 = vadd.f32 %v1396, %v1401
    %v1404 = vadd.f32 %v1397, %v1402
    %v1405 = vadd.f32 %v1299, %v1319
    %v1406 = vxor.u32 %v1405, 2147483648
    %v1407 = vmul.f32 %v1406, 1.442695
    %v1408 = vpow.pop %v1407
    %v1409 = vadd.f32 %v1408, 1.0
    %v1410 = vrcp.pop %v1409
    %v1411 = vmul.f32 %v1409, %v1410
    %v1412 = vsub.f32 1.0, %v1411
    %v1413 = vmul.f32 %v1410, %v1412
    %v1414 = vadd.f32 %v1410, %v1413
    %vm1415 = vweird.f32 %v1409
    %vm1416 = vweird.f32 %v1410
    %vm1417 = vmor %vm1415, %vm1416
    %v1418 = vsel %vm1417, %v1410, %v1414
    %v1419 = vand.u32 2147483647, %v1409
    %vm1420 = vcmp.eq.f32.partialorder %v1419, 8.507059e+37
    %v1421 = vand.u32 %v1409, 2147483648
    %v1422 = vor.u32 1.1754944e-38, %v1421
    %v1423 = vsel %vm1420, %v1422, %v1418
    %v1424 = vmul.f32 1.0, %v1423
    %1426 = vrot.lane.b32.xlu0 %v1319, 64
    %v1427 = vpop.permute.xlu0 %1426
    %v1429 = vmul.f32 %v1424, %v1427
    %1431 = vrot.lane.b32.xlu0 %v1429, 64
    %v1432 = vpop.permute.xlu0 %1431
    %v1434 = vadd.f32 %v1299, %v1432
    %v1435 = vtanh.pop %v1434
    %v1436 = vsub.f32 1.0, %v1424
    %1438 = vrot.lane.b32.xlu0 %v1435, 96
    %v1439 = vpop.permute.xlu0 %1438
    %v1441 = vmul.f32 %v1436, %v1439
    %v1442 = vmul.f32 %v1424, %v1244
    %v1443 = vadd.f32 %v1441, %v1442
    %v1446 = vrot.slane %v1404, 7
    %vm1447 = vcmask 1047559
    %v1448 = vsel %vm1447, %v1446, %v1403
    %1449 = vrot.lane.b32.xlu0 %v1448, 96
    %v1450 = vpop.permute.xlu0 %1449
    %v1453 = vrot.slane %v1443, 2
    %v1455 = vsel %vm141, %v1450, %v1453
    %v1457 = vrot.slane %v1455, 6
    %v1458 = vsel %vm143, %v1457, 0
    %1460 = vmatpush.msra.mxu0 0.0
    %1461 = vmatpush.msra.mxu0 0.0
    %1462 = vmatpush.msra.mxu0 0.0
    %1463 = vmatpush.msra.mxu0 0.0
    %1464 = vmatpush.msra.mxu0 0.0
    %1465 = vmatpush.msra.mxu0 0.0
    %1466 = vmatpush.msra.mxu0 0.0
    %1467 = vmatpush.msra.mxu0 0.0
    %1468 = vmatpush.msra.mxu0 %v122
    %1469 = vmatpush.msra.mxu0 %v119
    %1470 = vmatpush.msra.mxu0 %v116
    %1471 = vmatpush.msra.mxu0 %v113
    %1472 = vmatpush.msra.mxu0 %v110
    %1473 = vmatpush.msra.mxu0 %v107
    %1474 = vmatpush.msra.mxu0 %v104
    %1475 = vmatpush.msra.mxu0 %v101
    %1476 = vmatmul.f32.gmra.mxu0 %v1458
    %v1477 = vpop.f32.mrf.mxu0
    %v1478 = vadd.f32 %v128, %v1477
    %1479 = vdwg.mxu0
    %1480 = vmatpush.msra.mxu0 0.0
    %1481 = vmatpush.msra.mxu0 0.0
    %1482 = vmatpush.msra.mxu0 0.0
    %1483 = vmatpush.msra.mxu0 0.0
    %1484 = vmatpush.msra.mxu0 0.0
    %1485 = vmatpush.msra.mxu0 0.0
    %1486 = vmatpush.msra.mxu0 0.0
    %1487 = vmatpush.msra.mxu0 0.0
    %1488 = vmatpush.msra.mxu0 %v123
    %1489 = vmatpush.msra.mxu0 %v120
    %1490 = vmatpush.msra.mxu0 %v117
    %1491 = vmatpush.msra.mxu0 %v114
    %1492 = vmatpush.msra.mxu0 %v111
    %1493 = vmatpush.msra.mxu0 %v108
    %1494 = vmatpush.msra.mxu0 %v105
    %1495 = vmatpush.msra.mxu0 %v102
    %1496 = vmatmul.f32.gmra.mxu0 %v1458
    %v1497 = vpop.f32.mrf.mxu0
    %v1498 = vadd.f32 %v129, %v1497
    %1499 = vdwg.mxu0
    %1500 = vmatpush.msra.mxu0 0.0
    %1501 = vmatpush.msra.mxu0 0.0
    %1502 = vmatpush.msra.mxu0 0.0
    %1503 = vmatpush.msra.mxu0 0.0
    %1504 = vmatpush.msra.mxu0 0.0
    %1505 = vmatpush.msra.mxu0 0.0
    %1506 = vmatpush.msra.mxu0 0.0
    %1507 = vmatpush.msra.mxu0 0.0
    %1508 = vmatpush.msra.mxu0 %v124
    %1509 = vmatpush.msra.mxu0 %v121
    %1510 = vmatpush.msra.mxu0 %v118
    %1511 = vmatpush.msra.mxu0 %v115
    %1512 = vmatpush.msra.mxu0 %v112
    %1513 = vmatpush.msra.mxu0 %v109
    %1514 = vmatpush.msra.mxu0 %v106
    %1515 = vmatpush.msra.mxu0 %v103
    %1516 = vmatmul.f32.gmra.mxu0 %v1458
    %v1517 = vpop.f32.mrf.mxu0
    %v1518 = vadd.f32 %v130, %v1517
    %1519 = vdwg.mxu0
    %v1521 = vrot.slane %v1478, 1
    %v1522 = vrot.slane %v1478, 2
    %v1525 = vadd.f32 %v96, %v1521
    %v1526 = vadd.f32 %v99, %v1522
    %v1527 = vxor.u32 %v1525, 2147483648
    %v1528 = vxor.u32 %v1526, 2147483648
    %v1529 = vmul.f32 %v1527, 1.442695
    %v1530 = vpow.pop %v1529
    %v1531 = vmul.f32 %v1528, 1.442695
    %v1532 = vpow.pop %v1531
    %v1533 = vadd.f32 %v1530, 1.0
    %v1534 = vadd.f32 %v1532, 1.0
    %v1535 = vrcp.pop %v1533
    %v1536 = vmul.f32 %v1533, %v1535
    %v1537 = vsub.f32 1.0, %v1536
    %v1538 = vmul.f32 %v1535, %v1537
    %v1539 = vadd.f32 %v1535, %v1538
    %vm1540 = vweird.f32 %v1533
    %vm1541 = vweird.f32 %v1535
    %vm1542 = vmor %vm1540, %vm1541
    %v1543 = vsel %vm1542, %v1535, %v1539
    %v1544 = vand.u32 2147483647, %v1533
    %vm1545 = vcmp.eq.f32.partialorder %v1544, 8.507059e+37
    %v1546 = vand.u32 %v1533, 2147483648
    %v1547 = vor.u32 1.1754944e-38, %v1546
    %v1548 = vsel %vm1545, %v1547, %v1543
    %v1549 = vmul.f32 1.0, %v1548
    %v1550 = vrcp.pop %v1534
    %v1551 = vmul.f32 %v1534, %v1550
    %v1552 = vsub.f32 1.0, %v1551
    %v1553 = vmul.f32 %v1550, %v1552
    %v1554 = vadd.f32 %v1550, %v1553
    %vm1555 = vweird.f32 %v1534
    %vm1556 = vweird.f32 %v1550
    %vm1557 = vmor %vm1555, %vm1556
    %v1558 = vsel %vm1557, %v1550, %v1554
    %v1559 = vand.u32 2147483647, %v1534
    %vm1560 = vcmp.eq.f32.partialorder %v1559, 8.507059e+37
    %v1561 = vand.u32 %v1534, 2147483648
    %v1562 = vor.u32 1.1754944e-38, %v1561
    %v1563 = vsel %vm1560, %v1562, %v1558
    %v1564 = vmul.f32 1.0, %v1563
    %1565 = vrot.lane.b32.xlu0 %v1521, 64
    %v1566 = vpop.permute.xlu0 %1565
    %1567 = vrot.lane.b32.xlu0 %v1522, 64
    %v1568 = vpop.permute.xlu0 %1567
    %v1571 = vmul.f32 %v1549, %v1566
    %v1572 = vmul.f32 %v1564, %v1568
    %1575 = vrot.lane.b32.xlu0 %v1571, 64
    %v1576 = vpop.permute.xlu0 %1575
    %1577 = vrot.lane.b32.xlu0 %v1572, 64
    %v1578 = vpop.permute.xlu0 %1577
    %v1581 = vadd.f32 %v96, %v1576
    %v1582 = vadd.f32 %v99, %v1578
    %v1583 = vtanh.pop %v1581
    %v1584 = vtanh.pop %v1582
    %v1585 = vsub.f32 1.0, %v1549
    %v1586 = vsub.f32 1.0, %v1564
    %1589 = vrot.lane.b32.xlu0 %v1583, 96
    %v1590 = vpop.permute.xlu0 %1589
    %1591 = vrot.lane.b32.xlu0 %v1584, 96
    %v1592 = vpop.permute.xlu0 %1591
    %v1595 = vmul.f32 %v1585, %v1590
    %v1596 = vmul.f32 %v1586, %v1592
    %v1597 = vrot.slane %v1403, 7
    %v1600 = vmul.f32 %v1549, %v1597
    %v1601 = vmul.f32 %v1564, %v1446
    %v1602 = vadd.f32 %v1595, %v1600
    %v1603 = vadd.f32 %v1596, %v1601
    %v1604 = vadd.f32 %v1498, %v1518
    %v1605 = vxor.u32 %v1604, 2147483648
    %v1606 = vmul.f32 %v1605, 1.442695
    %v1607 = vpow.pop %v1606
    %v1608 = vadd.f32 %v1607, 1.0
    %v1609 = vrcp.pop %v1608
    %v1610 = vmul.f32 %v1608, %v1609
    %v1611 = vsub.f32 1.0, %v1610
    %v1612 = vmul.f32 %v1609, %v1611
    %v1613 = vadd.f32 %v1609, %v1612
    %vm1614 = vweird.f32 %v1608
    %vm1615 = vweird.f32 %v1609
    %vm1616 = vmor %vm1614, %vm1615
    %v1617 = vsel %vm1616, %v1609, %v1613
    %v1618 = vand.u32 2147483647, %v1608
    %vm1619 = vcmp.eq.f32.partialorder %v1618, 8.507059e+37
    %v1620 = vand.u32 %v1608, 2147483648
    %v1621 = vor.u32 1.1754944e-38, %v1620
    %v1622 = vsel %vm1619, %v1621, %v1617
    %v1623 = vmul.f32 1.0, %v1622
    %1625 = vrot.lane.b32.xlu0 %v1518, 64
    %v1626 = vpop.permute.xlu0 %1625
    %v1628 = vmul.f32 %v1623, %v1626
    %1630 = vrot.lane.b32.xlu0 %v1628, 64
    %v1631 = vpop.permute.xlu0 %1630
    %v1633 = vadd.f32 %v1498, %v1631
    %v1634 = vtanh.pop %v1633
    %v1635 = vsub.f32 1.0, %v1623
    %1637 = vrot.lane.b32.xlu0 %v1634, 96
    %v1638 = vpop.permute.xlu0 %1637
    %v1640 = vmul.f32 %v1635, %v1638
    %v1641 = vmul.f32 %v1623, %v1443
    %v1642 = vadd.f32 %v1640, %v1641
    %v1645 = vrot.slane %v1603, 7
    %1646 = vrot.lane.b32.xlu0 %v1602, 96
    %v1647 = vpop.permute.xlu0 %1646
    %1648 = vrot.lane.b32.xlu0 %v1645, 96
    %v1649 = vpop.permute.xlu0 %1648
    %v1653 = vrot.slane %v1642, 1
    %v1655 = vsel %vm141, %v1647, %v1653
    %v1656 = vsel %vm141, %v1649, %v1653
    %vm1659 = vcmask 1040384
    %v1660 = vrot.slane %v1655, 7
    %v1661 = vrot.slane %v1656, 7
    %v1662 = vsel %vm1659, %v1660, %v1661
    %v1663 = vsel %vm143, %v1662, 0
    %1665 = vmatpush.msra.mxu0 0.0
    %1666 = vmatpush.msra.mxu0 0.0
    %1667 = vmatpush.msra.mxu0 0.0
    %1668 = vmatpush.msra.mxu0 0.0
    %1669 = vmatpush.msra.mxu0 0.0
    %1670 = vmatpush.msra.mxu0 0.0
    %1671 = vmatpush.msra.mxu0 0.0
    %1672 = vmatpush.msra.mxu0 0.0
    %1673 = vmatpush.msra.mxu0 %v123
    %1674 = vmatpush.msra.mxu0 %v120
    %1675 = vmatpush.msra.mxu0 %v117
    %1676 = vmatpush.msra.mxu0 %v114
    %1677 = vmatpush.msra.mxu0 %v111
    %1678 = vmatpush.msra.mxu0 %v108
    %1679 = vmatpush.msra.mxu0 %v105
    %1680 = vmatpush.msra.mxu0 %v102
    %1681 = vmatmul.f32.gmra.mxu0 %v1663
    %v1682 = vpop.f32.mrf.mxu0
    %v1683 = vadd.f32 %v129, %v1682
    %1684 = vdwg.mxu0
    %1685 = vmatpush.msra.mxu0 0.0
    %1686 = vmatpush.msra.mxu0 0.0
    %1687 = vmatpush.msra.mxu0 0.0
    %1688 = vmatpush.msra.mxu0 0.0
    %1689 = vmatpush.msra.mxu0 0.0
    %1690 = vmatpush.msra.mxu0 0.0
    %1691 = vmatpush.msra.mxu0 0.0
    %1692 = vmatpush.msra.mxu0 0.0
    %1693 = vmatpush.msra.mxu0 %v124
    %1694 = vmatpush.msra.mxu0 %v121
    %1695 = vmatpush.msra.mxu0 %v118
    %1696 = vmatpush.msra.mxu0 %v115
    %1697 = vmatpush.msra.mxu0 %v112
    %1698 = vmatpush.msra.mxu0 %v109
    %1699 = vmatpush.msra.mxu0 %v106
    %1700 = vmatpush.msra.mxu0 %v103
    %1701 = vmatmul.f32.gmra.mxu0 %v1663
    %v1702 = vpop.f32.mrf.mxu0
    %v1703 = vadd.f32 %v130, %v1702
    %1704 = vdwg.mxu0
    %v1705 = vadd.f32 %v1683, %v1703
    %v1706 = vxor.u32 %v1705, 2147483648
    %v1707 = vmul.f32 %v1706, 1.442695
    %v1708 = vpow.pop %v1707
    %v1709 = vadd.f32 %v1708, 1.0
    %v1710 = vrcp.pop %v1709
    %v1711 = vmul.f32 %v1709, %v1710
    %v1712 = vsub.f32 1.0, %v1711
    %v1713 = vmul.f32 %v1710, %v1712
    %v1714 = vadd.f32 %v1710, %v1713
    %vm1715 = vweird.f32 %v1709
    %vm1716 = vweird.f32 %v1710
    %vm1717 = vmor %vm1715, %vm1716
    %v1718 = vsel %vm1717, %v1710, %v1714
    %v1719 = vand.u32 2147483647, %v1709
    %vm1720 = vcmp.eq.f32.partialorder %v1719, 8.507059e+37
    %v1721 = vand.u32 %v1709, 2147483648
    %v1722 = vor.u32 1.1754944e-38, %v1721
    %v1723 = vsel %vm1720, %v1722, %v1718
    %v1724 = vmul.f32 1.0, %v1723
    %1726 = vrot.lane.b32.xlu0 %v1703, 64
    %v1727 = vpop.permute.xlu0 %1726
    %v1729 = vmul.f32 %v1724, %v1727
    %1731 = vrot.lane.b32.xlu0 %v1729, 64
    %v1732 = vpop.permute.xlu0 %1731
    %v1734 = vadd.f32 %v1683, %v1732
    %v1735 = vtanh.pop %v1734
    %v1736 = vsub.f32 1.0, %v1724
    %1738 = vrot.lane.b32.xlu0 %v1735, 96
    %v1739 = vpop.permute.xlu0 %1738
    %v1741 = vmul.f32 %v1736, %v1739
    %v1742 = vmul.f32 %v1724, %v1642
    %v1743 = vadd.f32 %v1741, %v1742
    %v1744 = vld [vmem:[#allocation7 + $0x108] sm:$0xff]
    %v1745 = vld [vmem:[#allocation7 + $0x120] sm:$0xff]
    %v1746 = vld [vmem:[#allocation7 + $0x138] sm:$0xff]
    %v1747 = vld [vmem:[#allocation7 + $0x150] sm:$0xff]
    %v1748 = vld [vmem:[#allocation7 + $0x168] ss:$0 sm:$0xff]
    %1750 = vst [vmem:[#allocation1] ss:$4 sm:$0xff] %v448
    %s1751 = scalar_lea.vmem [#allocation1], 1
    %1752 = vst [vmem:[%s1751] ss:$4 sm:$0xff] %v647
    %s1753 = scalar_lea.vmem [#allocation1], 2
    %1754 = vst [vmem:[%s1753] ss:$4 sm:$0xff] %v846
    %s1755 = scalar_lea.vmem [#allocation1], 3
    %1756 = vst [vmem:[%s1755] ss:$4 sm:$0xff] %v1045
    %s1757 = scalar_lea.vmem [#allocation1], 32
    %1758 = vst [vmem:[%s1757] ss:$4 sm:$0xff] %v1244
    %s1759 = scalar_lea.vmem [#allocation1], 33
    %1760 = vst [vmem:[%s1759] ss:$4 sm:$0xff] %v1443
    %s1761 = scalar_lea.vmem [#allocation1], 34
    %1762 = vst [vmem:[%s1761] ss:$4 sm:$0xff] %v1642
    %s1763 = scalar_lea.vmem [#allocation1], 35
    %1764 = vst [vmem:[%s1763] ss:$4 sm:$0xff] %v1743
    %v1765 = vld.sshfl [vmem:[#allocation1] sm:$0xff pattern:$0x73625140]
    %v1766 = vld.sshfl [vmem:[#allocation1 + $0x20] sm:$0xff pattern:$0x73625140]
    %1767 = vrot.lane.b32.xlu0 %v1765, 96
    %v1768 = vpop.permute.xlu0 %1767
    %1769 = vrot.lane.b32.xlu0 %v1766, 96
    %v1770 = vpop.permute.xlu0 %1769
    %v1771 = vsel %vm141, %v1768, 0
    %v1773 = vsel %vm141, %v1770, 0
    %1775 = vmatpush.msra.mxu0 0.0
    %1776 = vmatpush.msra.mxu0 0.0
    %1777 = vmatpush.msra.mxu0 0.0
    %1778 = vmatpush.msra.mxu0 0.0
    %1779 = vmatpush.msra.mxu0 0.0
    %1780 = vmatpush.msra.mxu0 0.0
    %1781 = vmatpush.msra.mxu0 0.0
    %1782 = vmatpush.msra.mxu0 0.0
    %1783 = vmatpush.msra.mxu0 0.0
    %1784 = vmatpush.msra.mxu0 0.0
    %1785 = vmatpush.msra.mxu0 0.0
    %1786 = vmatpush.msra.mxu0 0.0
    %1787 = vmatpush.msra.mxu0 %v1747
    %1788 = vmatpush.msra.mxu0 %v1746
    %1789 = vmatpush.msra.mxu0 %v1745
    %1790 = vmatpush.msra.mxu0 %v1744
    %1791 = vmatmul.f32.gmra.mxu0 %v1771
    %v1792 = vpop.f32.mrf.mxu0
    %v1793 = vadd.f32 %v1748, %v1792
    %1794 = vmatmul.f32.gmra.mxu0 %v1773
    %v1795 = vpop.f32.mrf.mxu0
    %v1796 = vadd.f32 %v1748, %v1795
    %1797 = vdwg.mxu0
    %v1798 = vmax.f32 %v1793, 0.0
    %v1799 = vmax.f32 %v1796, 0.0
    %v1800 = vld [vmem:[#allocation7 + $0x180] sm:$0xff]
    %v1801 = vld [vmem:[#allocation7 + $0x198] sm:$0xff]
    %v1802 = vld [vmem:[#allocation7 + $0x1b0] sm:$0xff]
    %v1803 = vld [vmem:[#allocation7 + $0x1c8] sm:$0xff]
    %v1804 = vld [vmem:[#allocation7 + $0x1e0] sm:$0xff]
    %v1805 = vld [vmem:[#allocation7 + $0x1f8] sm:$0xff]
    %v1806 = vld [vmem:[#allocation7 + $0x210] sm:$0xff]
    %v1807 = vld [vmem:[#allocation7 + $0x228] sm:$0xff]
    %v1808 = vld [vmem:[#allocation7 + $0x240] sm:$0xff]
    %v1809 = vld [vmem:[#allocation7 + $0x258] sm:$0xff]
    %v1810 = vld [vmem:[#allocation7 + $0x270] sm:$0xff]
    %v1811 = vld [vmem:[#allocation7 + $0x288] sm:$0xff]
    %v1812 = vld [vmem:[#allocation7 + $0x2a0] sm:$0xff]
    %v1813 = vld [vmem:[#allocation7 + $0x2b8] sm:$0xff]
    %v1814 = vld [vmem:[#allocation7 + $0x2d0] sm:$0xff]
    %v1815 = vld [vmem:[#allocation7 + $0x2e8] sm:$0xff]
    %v1816 = vld [vmem:[#allocation7 + $0x300] ss:$0 sm:$0xff]
    %1817 = vmatpush.msra.mxu0 %v1815
    %1818 = vmatpush.msra.mxu0 %v1814
    %1819 = vmatpush.msra.mxu0 %v1813
    %1820 = vmatpush.msra.mxu0 %v1812
    %1821 = vmatpush.msra.mxu0 %v1811
    %1822 = vmatpush.msra.mxu0 %v1810
    %1823 = vmatpush.msra.mxu0 %v1809
    %1824 = vmatpush.msra.mxu0 %v1808
    %1825 = vmatpush.msra.mxu0 %v1807
    %1826 = vmatpush.msra.mxu0 %v1806
    %1827 = vmatpush.msra.mxu0 %v1805
    %1828 = vmatpush.msra.mxu0 %v1804
    %1829 = vmatpush.msra.mxu0 %v1803
    %1830 = vmatpush.msra.mxu0 %v1802
    %1831 = vmatpush.msra.mxu0 %v1801
    %1832 = vmatpush.msra.mxu0 %v1800
    %1833 = vmatmul.f32.gmra.mxu0 %v1798
    %v1834 = vpop.f32.mrf.mxu0
    %v1835 = vadd.f32 %v1816, %v1834
    %1836 = vmatmul.f32.gmra.mxu0 %v1799
    %v1837 = vpop.f32.mrf.mxu0
    %v1838 = vadd.f32 %v1816, %v1837
    %1839 = vdwg.mxu0
    %v1842 = vrot.slane %v1835, 2
    %v1843 = vrot.slane %v1835, 4
    %v1844 = vrot.slane %v1835, 6
    %v1845 = vrot.slane %v1838, 2
    %v1846 = vrot.slane %v1838, 4
    %v1847 = vrot.slane %v1838, 6
    %vm1854 = vcmask 1024
    %v1855 = vsel %vm1854, %v1835, -inf
    %v1856 = vsel %vm1854, %v1842, -inf
    %v1857 = vsel %vm1854, %v1843, -inf
    %v1858 = vsel %vm1854, %v1844, -inf
    %v1859 = vsel %vm1854, %v1838, -inf
    %v1860 = vmax.f32 %v1855, %v1859
    %v1861 = vsel %vm1854, %v1845, -inf
    %v1862 = vmax.f32 %v1856, %v1861
    %v1863 = vsel %vm1854, %v1846, -inf
    %v1864 = vmax.f32 %v1857, %v1863
    %v1865 = vsel %vm1854, %v1847, -inf
    %v1866 = vmax.f32 %v1858, %v1865
    %v1867 = vmax.f32 %v1860, %v1862
    %v1868 = vmax.f32 %v1864, %v1866
    %v1869 = vmax.f32 %v1867, %v1868
    %v1870 = vsub.f32 %v1835, %v1869
    %v1871 = vsub.f32 %v1842, %v1869
    %v1872 = vsub.f32 %v1843, %v1869
    %v1873 = vsub.f32 %v1844, %v1869
    %v1874 = vsub.f32 %v1838, %v1869
    %v1875 = vsub.f32 %v1845, %v1869
    %v1876 = vsub.f32 %v1846, %v1869
    %v1877 = vsub.f32 %v1847, %v1869
    %v1878 = vmul.f32 %v1870, 1.442695
    %v1879 = vpow.pop %v1878
    %v1880 = vmul.f32 %v1871, 1.442695
    %v1881 = vpow.pop %v1880
    %v1882 = vmul.f32 %v1872, 1.442695
    %v1883 = vpow.pop %v1882
    %v1884 = vmul.f32 %v1873, 1.442695
    %v1885 = vpow.pop %v1884
    %v1886 = vmul.f32 %v1874, 1.442695
    %v1887 = vpow.pop %v1886
    %v1888 = vmul.f32 %v1875, 1.442695
    %v1889 = vpow.pop %v1888
    %v1890 = vmul.f32 %v1876, 1.442695
    %v1891 = vpow.pop %v1890
    %v1892 = vmul.f32 %v1877, 1.442695
    %v1893 = vpow.pop %v1892
    %v1894 = vsel %vm1854, %v1879, 0.0
    %v1895 = vsel %vm1854, %v1881, 0.0
    %v1896 = vadd.f32 %v1894, %v1895
    %v1897 = vsel %vm1854, %v1883, 0.0
    %v1898 = vadd.f32 %v1896, %v1897
    %v1899 = vsel %vm1854, %v1885, 0.0
    %v1900 = vadd.f32 %v1898, %v1899
    %v1901 = vsel %vm1854, %v1887, 0.0
    %v1902 = vadd.f32 %v1900, %v1901
    %v1903 = vsel %vm1854, %v1889, 0.0
    %v1904 = vadd.f32 %v1902, %v1903
    %v1905 = vsel %vm1854, %v1891, 0.0
    %v1906 = vadd.f32 %v1904, %v1905
    %v1907 = vsel %vm1854, %v1893, 0.0
    %v1908 = vadd.f32 %v1906, %v1907
    %v1909 = vrcp.pop %v1908
    %v1910 = vmul.f32 %v1908, %v1909
    %v1911 = vsub.f32 1.0, %v1910
    %v1912 = vmul.f32 %v1909, %v1911
    %v1913 = vadd.f32 %v1909, %v1912
    %vm1914 = vweird.f32 %v1908
    %vm1915 = vweird.f32 %v1909
    %vm1916 = vmor %vm1914, %vm1915
    %v1917 = vsel %vm1916, %v1909, %v1913
    %v1918 = vand.u32 2147483647, %v1908
    %vm1919 = vcmp.eq.f32.partialorder %v1918, 8.507059e+37
    %v1920 = vand.u32 %v1908, 2147483648
    %v1921 = vor.u32 1.1754944e-38, %v1920
    %v1922 = vsel %vm1919, %v1921, %v1917
    %v1923 = vmul.f32 %v1879, %v1922
    %v1924 = vmul.f32 %v1881, %v1922
    %v1925 = vmul.f32 %v1883, %v1922
    %v1926 = vmul.f32 %v1885, %v1922
    %v1927 = vmul.f32 %v1887, %v1922
    %v1928 = vmul.f32 %v1889, %v1922
    %v1929 = vmul.f32 %v1891, %v1922
    %v1930 = vmul.f32 %v1893, %v1922
    %1932 = vset.pattern.permute.xlu0 0
    %1933 = vperm.xlu0 %1932, %v1923
    %v1934 = vpop.permute.xlu0 %1933
    %v1937 = vunpack.c.l.s4 269488144
    %v1938 = vunpack.c.0.s8 %v1937
    %v1939 = vperm.slane %v1934, %v1938
    %1941 = vset.pattern.permute.xlu0 0
    %1942 = vperm.xlu0 %1941, %v1924
    %v1943 = vpop.permute.xlu0 %1942
    %v1946 = vunpack.c.l.s4 269488144
    %v1947 = vunpack.c.0.s8 %v1946
    %v1948 = vperm.slane %v1943, %v1947
    %1950 = vset.pattern.permute.xlu0 0
    %1951 = vperm.xlu0 %1950, %v1925
    %v1952 = vpop.permute.xlu0 %1951
    %v1955 = vunpack.c.l.s4 269488144
    %v1956 = vunpack.c.0.s8 %v1955
    %v1957 = vperm.slane %v1952, %v1956
    %1959 = vset.pattern.permute.xlu0 0
    %1960 = vperm.xlu0 %1959, %v1926
    %v1961 = vpop.permute.xlu0 %1960
    %v1964 = vunpack.c.l.s4 269488144
    %v1965 = vunpack.c.0.s8 %v1964
    %v1966 = vperm.slane %v1961, %v1965
    %1968 = vset.pattern.permute.xlu0 0
    %1969 = vperm.xlu0 %1968, %v1927
    %v1970 = vpop.permute.xlu0 %1969
    %v1973 = vunpack.c.l.s4 269488144
    %v1974 = vunpack.c.0.s8 %v1973
    %v1975 = vperm.slane %v1970, %v1974
    %1977 = vset.pattern.permute.xlu0 0
    %1978 = vperm.xlu0 %1977, %v1928
    %v1979 = vpop.permute.xlu0 %1978
    %v1982 = vunpack.c.l.s4 269488144
    %v1983 = vunpack.c.0.s8 %v1982
    %v1984 = vperm.slane %v1979, %v1983
    %1986 = vset.pattern.permute.xlu0 0
    %1987 = vperm.xlu0 %1986, %v1929
    %v1988 = vpop.permute.xlu0 %1987
    %v1991 = vunpack.c.l.s4 269488144
    %v1992 = vunpack.c.0.s8 %v1991
    %v1993 = vperm.slane %v1988, %v1992
    %1995 = vset.pattern.permute.xlu0 0
    %1996 = vperm.xlu0 %1995, %v1930
    %v1997 = vpop.permute.xlu0 %1996
    %v2000 = vunpack.c.l.s4 269488144
    %v2001 = vunpack.c.0.s8 %v2000
    %v2002 = vperm.slane %v1997, %v2001
    %2003 = vrot.lane.b32.xlu0 %v448, 96
    %v2004 = vpop.permute.xlu0 %2003
    %2005 = vrot.lane.b32.xlu0 %v647, 96
    %v2006 = vpop.permute.xlu0 %2005
    %2007 = vrot.lane.b32.xlu0 %v846, 96
    %v2008 = vpop.permute.xlu0 %2007
    %2009 = vrot.lane.b32.xlu0 %v1045, 96
    %v2010 = vpop.permute.xlu0 %2009
    %2011 = vrot.lane.b32.xlu0 %v1244, 96
    %v2012 = vpop.permute.xlu0 %2011
    %2013 = vrot.lane.b32.xlu0 %v1443, 96
    %v2014 = vpop.permute.xlu0 %2013
    %2015 = vrot.lane.b32.xlu0 %v1642, 96
    %v2016 = vpop.permute.xlu0 %2015
    %2017 = vrot.lane.b32.xlu0 %v1743, 96
    %v2018 = vpop.permute.xlu0 %2017
    %v2027 = vmul.f32 %v1939, %v2004
    %v2028 = vmul.f32 %v1948, %v2006
    %v2029 = vmul.f32 %v1957, %v2008
    %v2030 = vmul.f32 %v1966, %v2010
    %v2031 = vmul.f32 %v1975, %v2012
    %v2032 = vmul.f32 %v1984, %v2014
    %v2033 = vmul.f32 %v1993, %v2016
    %v2034 = vmul.f32 %v2002, %v2018
    %vm2035 = vcmask 254976
    %v2036 = vsel %vm2035, %v2027, 0.0
    %v2037 = vsel %vm2035, %v2028, 0.0
    %v2038 = vadd.f32 %v2036, %v2037
    %v2039 = vsel %vm2035, %v2029, 0.0
    %v2040 = vadd.f32 %v2038, %v2039
    %v2041 = vsel %vm2035, %v2030, 0.0
    %v2042 = vadd.f32 %v2040, %v2041
    %v2043 = vsel %vm2035, %v2031, 0.0
    %v2044 = vadd.f32 %v2042, %v2043
    %v2045 = vsel %vm2035, %v2032, 0.0
    %v2046 = vadd.f32 %v2044, %v2045
    %v2047 = vsel %vm2035, %v2033, 0.0
    %v2048 = vadd.f32 %v2046, %v2047
    %v2049 = vsel %vm2035, %v2034, 0.0
    %v2050 = vadd.f32 %v2048, %v2049
    %v2051 = vld [vmem:[#allocation7 + $0x318] sm:$0xff]
    %v2052 = vld [vmem:[#allocation7 + $0x330] sm:$0xff]
    %v2053 = vld [vmem:[#allocation7 + $0x348] sm:$0xff]
    %v2054 = vld [vmem:[#allocation7 + $0x360] sm:$0xff]
    %v2055 = vld [vmem:[#allocation7 + $0x378] ss:$0 sm:$0xff]
    %v2057 = vsel %vm141, %v2050, 0
    %2059 = vmatpush.msra.mxu0 0.0
    %2060 = vmatpush.msra.mxu0 0.0
    %2061 = vmatpush.msra.mxu0 0.0
    %2062 = vmatpush.msra.mxu0 0.0
    %2063 = vmatpush.msra.mxu0 0.0
    %2064 = vmatpush.msra.mxu0 0.0
    %2065 = vmatpush.msra.mxu0 0.0
    %2066 = vmatpush.msra.mxu0 0.0
    %2067 = vmatpush.msra.mxu0 0.0
    %2068 = vmatpush.msra.mxu0 0.0
    %2069 = vmatpush.msra.mxu0 0.0
    %2070 = vmatpush.msra.mxu0 0.0
    %2071 = vmatpush.msra.mxu0 %v2054
    %2072 = vmatpush.msra.mxu0 %v2053
    %2073 = vmatpush.msra.mxu0 %v2052
    %2074 = vmatpush.msra.mxu0 %v2051
    %2075 = vmatmul.f32.gmra.mxu0 %v2057
    %v2076 = vpop.f32.mrf.mxu0
    %v2077 = vadd.f32 %v2055, %v2076
    %2078 = vdwg.mxu0
    %v2079 = vmax.f32 %v2077, 0.0
    %v2080 = vld [vmem:[#allocation7 + $0x390] sm:$0xff]
    %v2081 = vld [vmem:[#allocation7 + $0x3a8] sm:$0xff]
    %v2082 = vld [vmem:[#allocation7 + $0x3c0] sm:$0xff]
    %v2083 = vld [vmem:[#allocation7 + $0x3d8] sm:$0xff]
    %v2084 = vld [vmem:[#allocation7 + $0x3f0] sm:$0xff]
    %v2085 = vld [vmem:[#allocation7 + $0x408] sm:$0xff]
    %v2086 = vld [vmem:[#allocation7 + $0x420] sm:$0xff]
    %v2087 = vld [vmem:[#allocation7 + $0x438] sm:$0xff]
    %v2088 = vld [vmem:[#allocation7 + $0x450] sm:$0xff]
    %v2089 = vld [vmem:[#allocation7 + $0x468] sm:$0xff]
    %v2090 = vld [vmem:[#allocation7 + $0x480] sm:$0xff]
    %v2091 = vld [vmem:[#allocation7 + $0x498] sm:$0xff]
    %v2092 = vld [vmem:[#allocation7 + $0x4b0] sm:$0xff]
    %v2093 = vld [vmem:[#allocation7 + $0x4c8] sm:$0xff]
    %v2094 = vld [vmem:[#allocation7 + $0x4e0] sm:$0xff]
    %v2095 = vld [vmem:[#allocation7 + $0x4f8] sm:$0xff]
    %v2096 = vld [vmem:[#allocation7 + $0x510] ss:$0 sm:$0xff]
    %2097 = vmatpush.msra.mxu0 %v2095
    %2098 = vmatpush.msra.mxu0 %v2094
    %2099 = vmatpush.msra.mxu0 %v2093
    %2100 = vmatpush.msra.mxu0 %v2092
    %2101 = vmatpush.msra.mxu0 %v2091
    %2102 = vmatpush.msra.mxu0 %v2090
    %2103 = vmatpush.msra.mxu0 %v2089
    %2104 = vmatpush.msra.mxu0 %v2088
    %2105 = vmatpush.msra.mxu0 %v2087
    %2106 = vmatpush.msra.mxu0 %v2086
    %2107 = vmatpush.msra.mxu0 %v2085
    %2108 = vmatpush.msra.mxu0 %v2084
    %2109 = vmatpush.msra.mxu0 %v2083
    %2110 = vmatpush.msra.mxu0 %v2082
    %2111 = vmatpush.msra.mxu0 %v2081
    %2112 = vmatpush.msra.mxu0 %v2080
    %2113 = vmatmul.f32.gmra.mxu0 %v2079
    %v2114 = vpop.f32.mrf.mxu0
    %v2115 = vadd.f32 %v2096, %v2114
    %2116 = vdwg.mxu0
    %v2117 = vmax.f32 %v2115, 0.0
    %v2118 = vld [vmem:[#allocation7 + $0x528] sm:$0xff]
    %v2119 = vld [vmem:[#allocation7 + $0x540] sm:$0xff]
    %v2120 = vld [vmem:[#allocation7 + $0x558] sm:$0xff]
    %v2121 = vld [vmem:[#allocation7 + $0x570] sm:$0xff]
    %v2122 = vld [vmem:[#allocation7 + $0x588] sm:$0xff]
    %v2123 = vld [vmem:[#allocation7 + $0x5a0] sm:$0xff]
    %v2124 = vld [vmem:[#allocation7 + $0x5b8] sm:$0xff]
    %v2125 = vld [vmem:[#allocation7 + $0x5d0] sm:$0xff]
    %v2126 = vld [vmem:[#allocation7 + $0x5e8] sm:$0xff]
    %v2127 = vld [vmem:[#allocation7 + $0x600] sm:$0xff]
    %v2128 = vld [vmem:[#allocation7 + $0x618] sm:$0xff]
    %v2129 = vld [vmem:[#allocation7 + $0x630] sm:$0xff]
    %v2130 = vld [vmem:[#allocation7 + $0x648] sm:$0xff]
    %v2131 = vld [vmem:[#allocation7 + $0x660] sm:$0xff]
    %v2132 = vld [vmem:[#allocation7 + $0x678] sm:$0xff]
    %v2133 = vld [vmem:[#allocation7 + $0x690] sm:$0xff]
    %v2134 = vld [vmem:[#allocation7 + $0x6a8] ss:$0 sm:$0xff]
    %2135 = vmatpush.msra.mxu0 %v2133
    %2136 = vmatpush.msra.mxu0 %v2132
    %2137 = vmatpush.msra.mxu0 %v2131
    %2138 = vmatpush.msra.mxu0 %v2130
    %2139 = vmatpush.msra.mxu0 %v2129
    %2140 = vmatpush.msra.mxu0 %v2128
    %2141 = vmatpush.msra.mxu0 %v2127
    %2142 = vmatpush.msra.mxu0 %v2126
    %2143 = vmatpush.msra.mxu0 %v2125
    %2144 = vmatpush.msra.mxu0 %v2124
    %2145 = vmatpush.msra.mxu0 %v2123
    %2146 = vmatpush.msra.mxu0 %v2122
    %2147 = vmatpush.msra.mxu0 %v2121
    %2148 = vmatpush.msra.mxu0 %v2120
    %2149 = vmatpush.msra.mxu0 %v2119
    %2150 = vmatpush.msra.mxu0 %v2118
    %2151 = vmatmul.f32.gmra.mxu0 %v2117
    %v2152 = vpop.f32.mrf.mxu0
    %v2153 = vadd.f32 %v2134, %v2152
    %2154 = vdwg.mxu0
    %vm2155 = vcmask 25600
    %v2156 = vsel %vm2155, %v2153, -inf
    %2157 = vmax.xlane.f32.xlu0 %v2156
    %v2158 = vpop.xlane.xlu0 %2157
    %v2159 = vsub.f32 %v2153, %v2158
    %v2160 = vmul.f32 %v2159, 1.442695
    %v2161 = vpow.pop %v2160
    %v2162 = vsel %vm2155, %v2161, 0.0
    %2163 = vadd.xlane.f32.xlu0 %v2162
    %v2164 = vpop.xlane.xlu0 %2163
    %v2165 = vrcp.pop %v2164
    %v2166 = vmul.f32 %v2164, %v2165
    %v2167 = vsub.f32 1.0, %v2166
    %v2168 = vmul.f32 %v2165, %v2167
    %v2169 = vadd.f32 %v2165, %v2168
    %vm2170 = vweird.f32 %v2164
    %vm2171 = vweird.f32 %v2165
    %vm2172 = vmor %vm2170, %vm2171
    %v2173 = vsel %vm2172, %v2165, %v2169
    %v2174 = vand.u32 2147483647, %v2164
    %vm2175 = vcmp.eq.f32.partialorder %v2174, 8.507059e+37
    %v2176 = vand.u32 %v2164, 2147483648
    %v2177 = vor.u32 1.1754944e-38, %v2176
    %v2178 = vsel %vm2175, %v2177, %v2173
    %v2179 = vmul.f32 %v2161, %v2178
    %v2180 = vxor.u32 %v2153, 2147483648
    %v2181 = vmul.f32 %v2180, 1.442695
    %v2182 = vpow.pop %v2181
    %v2183 = vadd.f32 %v2182, 1.0
    %v2184 = vrcp.pop %v2183
    %v2185 = vmul.f32 %v2183, %v2184
    %v2186 = vsub.f32 1.0, %v2185
    %v2187 = vmul.f32 %v2184, %v2186
    %v2188 = vadd.f32 %v2184, %v2187
    %vm2189 = vweird.f32 %v2183
    %vm2190 = vweird.f32 %v2184
    %vm2191 = vmor %vm2189, %vm2190
    %v2192 = vsel %vm2191, %v2184, %v2188
    %v2193 = vand.u32 2147483647, %v2183
    %vm2194 = vcmp.eq.f32.partialorder %v2193, 8.507059e+37
    %v2195 = vand.u32 %v2183, 2147483648
    %v2196 = vor.u32 1.1754944e-38, %v2195
    %v2197 = vsel %vm2194, %v2196, %v2192
    %v2198 = vmul.f32 1.0, %v2197
    %2199 = vst.msk [vmem:[#allocation8] sm:$0x3] %vm2155, %v2179
    %vm2200 = vcmask 261127
    %2201 = vst.msk [vmem:[#allocation9 - $0x7] sm:$0x80] %vm2200, %v1647
    %vm2202 = vcmask 253952
    %2203 = vst.msk [vmem:[#allocation9 + $0x1] sm:$0x1] %vm2202, %v1649
    %s2204 = scalar_lea.vmem [#allocation9], 2
    %2205 = vst.msk [vmem:[%s2204] sm:$0x3] %vm2035, %v2018
    %2206 = vst.msk [vmem:[#allocation11] sm:$0x3] %vm2035, %v2050
    %2208 = vrot.lane.b32.xlu0 %v2198, 124
    %v2209 = vpop.permute.xlu0 %2208
    %2211 = vst.msk [vmem:[%s6] sm:$0x3] %vm1854, %v2209
    // Predicated region
    $region26: #{flood_gru_actor_forward.1} parent=1 // pred_check
      _
    $region27: #{flood_gru_actor_forward.1} parent=1 // pred_check_branch
      %2213 = sbr.rel (0) target = $region29
    $region28: #{flood_gru_actor_forward.1} parent=1 // pred_region
      %2215 = vsyncadd [#allocation4], 0
      %s2217 = sshll.u32 [#allocation8], 4
      %s2218 = int_to_ptr.vmem [resolvable:$true] %s2217
      %s2219 = sshll.u32 %s3, 4
      %s2220 = int_to_ptr.hbm [resolvable:$true] %s2219
      %2222 = dma.vmem_to_hbm [thread:$0]  %s2218, 32, %s2220, [#allocation4]
    $region29: #{flood_gru_actor_forward.1} parent=1 // pred_fallthru
      _
    // Predicated region
    $region30: #{flood_gru_actor_forward.1} parent=1 // pred_check
      _
    $region31: #{flood_gru_actor_forward.1} parent=1 // pred_check_branch
      %2224 = sbr.rel (0) target = $region33
    $region32: #{flood_gru_actor_forward.1} parent=1 // pred_region
      %2226 = vsyncadd [#allocation10], 0
      %s2227 = sshll.u32 [#allocation9], 4
      %s2228 = int_to_ptr.vmem [resolvable:$true] %s2227
      %s2229 = sshll.u32 %s4, 4
      %s2230 = int_to_ptr.hbm [resolvable:$true] %s2229
      %2235 = dma.vmem_to_hbm [thread:$0]  %s2228, 64, %s2230, [#allocation10], 32, 32, 2
    $region33: #{flood_gru_actor_forward.1} parent=1 // pred_fallthru
      _
    // Predicated region
    $region34: #{flood_gru_actor_forward.1} parent=1 // pred_check
      _
    $region35: #{flood_gru_actor_forward.1} parent=1 // pred_check_branch
      %2237 = sbr.rel (0) target = $region37
    $region36: #{flood_gru_actor_forward.1} parent=1 // pred_region
      %2239 = vsyncadd [#allocation10], 0
      %s2241 = sshll.u32 [#allocation11], 4
      %s2242 = int_to_ptr.vmem [resolvable:$true] %s2241
      %s2243 = sshll.u32 %s5, 4
      %s2244 = int_to_ptr.hbm [resolvable:$true] %s2243
      %2246 = dma.vmem_to_hbm [thread:$0]  %s2242, 32, %s2244, [#allocation10]
    $region37: #{flood_gru_actor_forward.1} parent=1 // pred_fallthru
      _
    // Predicated region
    $region38: #{flood_gru_actor_forward.1} parent=1 // pred_check
      _
    $region39: #{flood_gru_actor_forward.1} parent=1 // pred_check_branch
      %2248 = sbr.rel (0) target = $region41
    $region40: #{flood_gru_actor_forward.1} parent=1 // pred_region
      _
    $region41: #{flood_gru_actor_forward.1} parent=1 // pred_fallthru
      _
    // Predicated region
    $region42: #{flood_gru_actor_forward.1} parent=1 // pred_check
      _
    $region43: #{flood_gru_actor_forward.1} parent=1 // pred_check_branch
      %2250 = sbr.rel (0) target = $region45
    $region44: #{flood_gru_actor_forward.1} parent=1 // pred_region
      %2252 = dma.done [#allocation4], 32
    $region45: #{flood_gru_actor_forward.1} parent=1 // pred_fallthru
      _
    // Predicated region
    $region46: #{flood_gru_actor_forward.1} parent=1 // pred_check
      _
    $region47: #{flood_gru_actor_forward.1} parent=1 // pred_check_branch
      %2254 = sbr.rel (0) target = $region49
    $region48: #{flood_gru_actor_forward.1} parent=1 // pred_region
      %2256 = dma.done [#allocation10], 64
    $region49: #{flood_gru_actor_forward.1} parent=1 // pred_fallthru
      _
    // Predicated region
    $region50: #{flood_gru_actor_forward.1} parent=1 // pred_check
      _
    $region51: #{flood_gru_actor_forward.1} parent=1 // pred_check_branch
      %2258 = sbr.rel (0) target = $region53
    $region52: #{flood_gru_actor_forward.1} parent=1 // pred_region
      %2260 = dma.done [#allocation10], 32
    $region53: #{flood_gru_actor_forward.1} parent=1 // pred_fallthru
      _
    // Predicated region
    $region54: #{flood_gru_actor_forward.1} parent=1 // pred_check
      _
    $region55: #{flood_gru_actor_forward.1} parent=1 // pred_check_branch
      %2262 = sbr.rel (0) target = $region57
    $region56: #{flood_gru_actor_forward.1} parent=1 // pred_region
      _
    $region57: #{flood_gru_actor_forward.1} parent=1 // pred_fallthru
      _
    %2263 = vsyncpa [#allocation3], 1
    %2264 = vsyncpa [#allocation6], 1
    %2265 = vsyncpa [#allocation4], 1
    %2266 = vsyncpa [#allocation10], 1

</llo_original>
